<compile_context>
chip_gen: v7x
topology: tpu7x:2x2x1
jax: 0.10.0
libtpu: 0.0.40
codegen_flags: <defaults>
</compile_context>

<pallas_src>
import functools

import jax
import jax.numpy as jnp
from jax.experimental import pallas as pl
from jax.experimental.pallas import tpu as pltpu


# Geometry fixed by the module: the last conv has a 28x28 kernel, so the input
# must be 28x28 spatially.
H = W = 28
HP = WP = 30          # spatially padded by 1 pixel for the 3x3 convs
P = HP * WP           # 900 flattened padded positions (lane dimension)
FP = P + 64           # 964: tail so shifted windows [off, off+P) stay in-bounds
NEG_SLOPE = 0.01      # nn.LeakyReLU() default


def _leaky(x):
    return jnp.where(x >= 0, x, NEG_SLOPE * x)


def _convnet_kernel(x_ref, w1_ref, b1_ref, w2_ref, b2_ref, w3_ref, b3_ref,
                    mask_ref, o_ref, *, cdt):
    """One image per grid step.  Layout: (channels, flattened padded spatial)."""
    x = x_ref[0]                       # (C, FP)  compute dtype (bf16)
    mask = mask_ref[...]               # (1, P)   1.0 on valid (i<28, j<28) cols

    offs = [dy * WP + dx for dy in range(3) for dx in range(3)]

    # ---- layer 1: 3x3 conv (pad=1) + LeakyReLU ------------------------------
    # In-VMEM "im2col": stack the 9 shifted windows along sublanes -> one matmul.
    cols1 = jnp.concatenate([x[:, off:off + P] for off in offs], axis=0)   # (9C, P)
    a1 = jnp.dot(w1_ref[...], cols1, preferred_element_type=jnp.float32)   # (10, P)
    a1 = _leaky(a1 + b1_ref[...]) * mask           # zero the wrap-around garbage

    # Re-embed into the zero-padded 30x30 layout of the next conv:
    # padded_flat[(i+1)*WP + (j+1)] = a1[i*WP + j]  ->  shift by WP + 1 = 31.
    a1 = a1.astype(cdt)
    nr = a1.shape[0]
    buf2 = jnp.concatenate(
        [jnp.zeros((nr, WP + 1), cdt),
         a1[:, :H * WP],
         jnp.zeros((nr, FP - (WP + 1) - H * WP), cdt)], axis=1)            # (10, FP)

    # ---- layer 2: 3x3 conv (pad=1) + LeakyReLU ------------------------------
    cols2 = jnp.concatenate([buf2[:, off:off + P] for off in offs], axis=0)  # (90, P)
    a2 = jnp.dot(w2_ref[...], cols2, preferred_element_type=jnp.float32)     # (15, P)
    a2 = _leaky(a2 + b2_ref[...])
    # (no mask needed: the packed w3 is zero on the invalid padded positions)

    # ---- layer 3: 28x28 conv == fully connected over 15 x 900 ---------------
    # w3 is packed lane-dense as (P, Cmid*Cout):  w3_ref[k, c*Cout + o].
    # t[c, c*Cout + o] = sum_k a2[c, k] * w3[o, c, k]; sum the diagonal blocks.
    t = jnp.dot(a2.astype(cdt), w3_ref[...],
                preferred_element_type=jnp.float32)                          # (15, 150)
    nout = o_ref.shape[-1]
    out = b3_ref[...]                                                        # (1, 10)
    for c in range(t.shape[0]):
        out = out + t[c:c + 1, c * nout:(c + 1) * nout]
    o_ref[0] = out.astype(o_ref.dtype)


# -----------------------------------------------------------------------------
# One-time weight packing (hoisted out of the per-forward path).
# -----------------------------------------------------------------------------
def _prep_conv3x3(w):
    # (Cout, Cin, 3, 3) OIHW -> (Cout, 9*Cin); column order (ky, kx, cin) matches
    # the in-kernel window concatenation order.
    co, ci, kh, kw = w.shape
    return w.transpose(0, 2, 3, 1).reshape(co, kh * kw * ci)


def prepare_params(params, compute_dtype=jnp.bfloat16):
    (w1, b1), (w2, b2), (w3, b3) = params
    co3, ci3 = w3.shape[0], w3.shape[1]
    # Zero-pad the 28x28 kernel to the 30x30 padded layout, then lay it out
    # lane-dense: w3p[k, c*Cout + o] = w3[o, c, k//30, k%30] (0 on padding).
    w3p = jnp.pad(w3, ((0, 0), (0, 0), (0, HP - H), (0, WP - W)))
    w3p = w3p.reshape(co3, ci3, P).transpose(2, 1, 0).reshape(P, ci3 * co3)
    # Valid-output-column mask for the flattened padded layout.
    k = jnp.arange(P)
    mask = (((k % WP) < W) & (k < H * WP)).astype(jnp.float32).reshape(1, P)
    return dict(
        w1=_prep_conv3x3(w1).astype(compute_dtype),
        b1=b1.reshape(-1, 1).astype(jnp.float32),
        w2=_prep_conv3x3(w2).astype(compute_dtype),
        b2=b2.reshape(-1, 1).astype(jnp.float32),
        w3=w3p.astype(compute_dtype),
        b3=b3.reshape(1, -1).astype(jnp.float32),
        mask=mask,
    )


# -----------------------------------------------------------------------------
# Forward pass: NCHW in -> (N, 10) logits out.
# -----------------------------------------------------------------------------
@jax.jit
def convnet_forward(x, packed):
    N, C = x.shape[0], x.shape[1]
    cdt = packed["w1"].dtype
    co = packed["b3"].shape[-1]

    # NCHW -> channels-first, flattened spatially-padded layout (C, 900 + tail).
    xp = jnp.pad(x, ((0, 0), (0, 0), (1, 1), (1, 1))).reshape(N, C, P)
    xp = jnp.pad(xp, ((0, 0), (0, 0), (0, FP - P))).astype(cdt)

    const = lambda n: (0, 0)     # weights: resident in VMEM across the grid
    out = pl.pallas_call(
        functools.partial(_convnet_kernel, cdt=cdt),
        out_shape=jax.ShapeDtypeStruct((N, 1, co), jnp.float32),
        grid=(N,),
        in_specs=[
            pl.BlockSpec((1, C, FP), lambda n: (n, 0, 0)),
            pl.BlockSpec(packed["w1"].shape, const),
            pl.BlockSpec(packed["b1"].shape, const),
            pl.BlockSpec(packed["w2"].shape, const),
            pl.BlockSpec(packed["b2"].shape, const),
            pl.BlockSpec(packed["w3"].shape, const),
            pl.BlockSpec(packed["b3"].shape, const),
            pl.BlockSpec(packed["mask"].shape, const),
        ],
        out_specs=pl.BlockSpec((1, 1, co), lambda n: (n, 0, 0)),
        compiler_params=pltpu.CompilerParams(
            dimension_semantics=("parallel",)),
    )(xp, packed["w1"], packed["b1"], packed["w2"], packed["b2"],
      packed["w3"], packed["b3"], packed["mask"])
    return out.reshape(N, co)


# -----------------------------------------------------------------------------
# Module-equivalent init ('Uniform': weights ~ U[0,1), biases = 0) + reference.
# -----------------------------------------------------------------------------
def init_params(key, in_channels, output=10):
    k1, k2, k3 = jax.random.split(key, 3)
    w1 = jax.random.uniform(k1, (10, in_channels, 3, 3), jnp.float32)
    w2 = jax.random.uniform(k2, (15, 10, 3, 3), jnp.float32)
    w3 = jax.random.uniform(k3, (output, 15, 28, 28), jnp.float32)
    return ((w1, jnp.zeros((10,), jnp.float32)),
            (w2, jnp.zeros((15,), jnp.float32)),
            (w3, jnp.zeros((output,), jnp.float32)))


def convnet_reference(x, params):
    """Plain-JAX replica of ConvNetwork.forward (f32), for a sanity check."""
    (w1, b1), (w2, b2), (w3, b3) = params

    def conv(a, w, b, pad):
        out = jax.lax.conv_general_dilated(
            a, w, window_strides=(1, 1), padding=[(pad, pad), (pad, pad)],
            dimension_numbers=("NCHW", "OIHW", "NCHW"))
        return out + b.reshape(1, -1, 1, 1)

    a = jax.nn.leaky_relu(conv(x, w1, b1, 1), NEG_SLOPE)
    a = jax.nn.leaky_relu(conv(a, w2, b2, 1), NEG_SLOPE)
    a = conv(a, w3, b3, 0)
    return a[:, :, 0, 0]            # .squeeze(2).squeeze(2)


if __name__ == "__main__":
    key = jax.random.PRNGKey(0)
    kx, kp = jax.random.split(key)

    # Input must be 28x28 spatially (final conv kernel is 28x28 -> 1x1).
    N, C = 2, 3
    x = jax.random.uniform(kx, (N, C, 28, 28), jnp.float32)
    params = init_params(kp, C, output=10)

    packed = prepare_params(params, compute_dtype=jnp.bfloat16)
    out = jax.block_until_ready(convnet_forward(x, packed))
    assert out.shape == (N, 10), out.shape

    # Correctness check against the plain-JAX reference (bf16 MXU operands,
    # f32 accumulation -> loose relative tolerance).
    ref = convnet_reference(x, params)
    rel_err = jnp.max(jnp.abs(out - ref) / (jnp.abs(ref) + 1e-3))
    assert rel_err < 5e-2, f"max relative error {rel_err}"

    print("KERNEL_OK")
</pallas_src>

<mosaic_0001>
module attributes {stable_mosaic.version = 11 : i64} {
  func.func @_convnet_kernel(%arg0: i32, %arg1: memref<1x3x964xbf16, #tpu.memory_space<vmem>>, %arg2: memref<10x27xbf16, #tpu.memory_space<vmem>>, %arg3: memref<10x1xf32, #tpu.memory_space<vmem>>, %arg4: memref<15x90xbf16, #tpu.memory_space<vmem>>, %arg5: memref<15x1xf32, #tpu.memory_space<vmem>>, %arg6: memref<900x150xbf16, #tpu.memory_space<vmem>>, %arg7: memref<1x10xf32, #tpu.memory_space<vmem>>, %arg8: memref<1x900xf32, #tpu.memory_space<vmem>>, %arg9: memref<1x1x10xf32, #tpu.memory_space<vmem>>) attributes {dimension_semantics = [#tpu.dimension_semantics<parallel>], iteration_bounds = array<i64: 2>, scalar_prefetch = 0 : i64, scratch_operands = 0 : i64, tpu.core_type = #tpu.core_type<tc>, window_params = [{transform_indices = @transform_0, window_bounds = array<i64: 1, 3, 964>}, {pipeline_mode = #tpu.pipeline_mode<synchronous>, transform_indices = @transform_1, window_bounds = array<i64: 10, 27>}, {pipeline_mode = #tpu.pipeline_mode<synchronous>, transform_indices = @transform_2, window_bounds = array<i64: 10, 1>}, {pipeline_mode = #tpu.pipeline_mode<synchronous>, transform_indices = @transform_3, window_bounds = array<i64: 15, 90>}, {pipeline_mode = #tpu.pipeline_mode<synchronous>, transform_indices = @transform_4, window_bounds = array<i64: 15, 1>}, {pipeline_mode = #tpu.pipeline_mode<synchronous>, transform_indices = @transform_5, window_bounds = array<i64: 900, 150>}, {pipeline_mode = #tpu.pipeline_mode<synchronous>, transform_indices = @transform_6, window_bounds = array<i64: 1, 10>}, {pipeline_mode = #tpu.pipeline_mode<synchronous>, transform_indices = @transform_7, window_bounds = array<i64: 1, 900>}, {transform_indices = @transform_8, window_bounds = array<i64: 1, 1, 10>}]} {
    %c0 = arith.constant 0 : index
    %c0_0 = arith.constant 0 : index
    %c0_1 = arith.constant 0 : index
    %0 = vector.load %arg1[%c0, %c0_0, %c0_1] : memref<1x3x964xbf16, #tpu.memory_space<vmem>>, vector<1x3x964xbf16>
    %1 = vector.shape_cast %0 : vector<1x3x964xbf16> to vector<3x964xbf16>
    %c0_2 = arith.constant 0 : index
    %c0_3 = arith.constant 0 : index
    %2 = vector.load %arg8[%c0_2, %c0_3] : memref<1x900xf32, #tpu.memory_space<vmem>>, vector<1x900xf32>
    %3 = vector.extract_strided_slice %1 {offsets = [0, 0], sizes = [3, 900], strides = [1, 1]} : vector<3x964xbf16> to vector<3x900xbf16>
    %4 = vector.extract_strided_slice %1 {offsets = [0, 1], sizes = [3, 900], strides = [1, 1]} : vector<3x964xbf16> to vector<3x900xbf16>
    %5 = vector.extract_strided_slice %1 {offsets = [0, 2], sizes = [3, 900], strides = [1, 1]} : vector<3x964xbf16> to vector<3x900xbf16>
    %6 = vector.extract_strided_slice %1 {offsets = [0, 30], sizes = [3, 900], strides = [1, 1]} : vector<3x964xbf16> to vector<3x900xbf16>
    %7 = vector.extract_strided_slice %1 {offsets = [0, 31], sizes = [3, 900], strides = [1, 1]} : vector<3x964xbf16> to vector<3x900xbf16>
    %8 = vector.extract_strided_slice %1 {offsets = [0, 32], sizes = [3, 900], strides = [1, 1]} : vector<3x964xbf16> to vector<3x900xbf16>
    %9 = vector.extract_strided_slice %1 {offsets = [0, 60], sizes = [3, 900], strides = [1, 1]} : vector<3x964xbf16> to vector<3x900xbf16>
    %10 = vector.extract_strided_slice %1 {offsets = [0, 61], sizes = [3, 900], strides = [1, 1]} : vector<3x964xbf16> to vector<3x900xbf16>
    %11 = vector.extract_strided_slice %1 {offsets = [0, 62], sizes = [3, 900], strides = [1, 1]} : vector<3x964xbf16> to vector<3x900xbf16>
    %12 = tpu.concatenate %3, %4, %5, %6, %7, %8, %9, %10, %11 in 0 : vector<3x900xbf16>, vector<3x900xbf16>, vector<3x900xbf16>, vector<3x900xbf16>, vector<3x900xbf16>, vector<3x900xbf16>, vector<3x900xbf16>, vector<3x900xbf16>, vector<3x900xbf16> -> vector<27x900xbf16>
    %c0_4 = arith.constant 0 : index
    %c0_5 = arith.constant 0 : index
    %13 = vector.load %arg2[%c0_4, %c0_5] : memref<10x27xbf16, #tpu.memory_space<vmem>>, vector<10x27xbf16>
    %cst = arith.constant dense<0.000000e+00> : vector<10x900xf32>
    %14 = tpu.matmul %13, %12, %cst {dimension_numbers = #tpu.dot_dimension_numbers<[1], [0], [0], [1], [0, 0, 1, 1], [], []>} : vector<10x27xbf16>, vector<27x900xbf16>, vector<10x900xf32> -> vector<10x900xf32>
    %c0_6 = arith.constant 0 : index
    %c0_7 = arith.constant 0 : index
    %15 = vector.load %arg3[%c0_6, %c0_7] : memref<10x1xf32, #tpu.memory_space<vmem>>, vector<10x1xf32>
    %16 = vector.broadcast %15 : vector<10x1xf32> to vector<10x900xf32>
    %17 = arith.addf %14, %16 : vector<10x900xf32>
    %cst_8 = arith.constant 0.000000e+00 : f32
    %18 = vector.broadcast %cst_8 : f32 to vector<10x900xf32>
    %19 = arith.cmpf oge, %17, %18 : vector<10x900xf32>
    %cst_9 = arith.constant 0.00999999977 : f32
    %20 = vector.broadcast %cst_9 : f32 to vector<10x900xf32>
    %21 = arith.mulf %20, %17 : vector<10x900xf32>
    %22 = arith.select %19, %17, %21 : vector<10x900xi1>, vector<10x900xf32>
    %23 = vector.broadcast %2 : vector<1x900xf32> to vector<10x900xf32>
    %24 = arith.mulf %22, %23 : vector<10x900xf32>
    %25 = arith.truncf %24 : vector<10x900xf32> to vector<10x900xbf16>
    %cst_10 = arith.constant 0.000000e+00 : bf16
    %26 = vector.broadcast %cst_10 : bf16 to vector<10x31xbf16>
    %27 = vector.extract_strided_slice %25 {offsets = [0, 0], sizes = [10, 840], strides = [1, 1]} : vector<10x900xbf16> to vector<10x840xbf16>
    %cst_11 = arith.constant 0.000000e+00 : bf16
    %28 = vector.broadcast %cst_11 : bf16 to vector<10x93xbf16>
    %29 = tpu.concatenate %26, %27, %28 in 1 : vector<10x31xbf16>, vector<10x840xbf16>, vector<10x93xbf16> -> vector<10x964xbf16>
    %30 = vector.extract_strided_slice %29 {offsets = [0, 0], sizes = [10, 900], strides = [1, 1]} : vector<10x964xbf16> to vector<10x900xbf16>
    %31 = vector.extract_strided_slice %29 {offsets = [0, 1], sizes = [10, 900], strides = [1, 1]} : vector<10x964xbf16> to vector<10x900xbf16>
    %32 = vector.extract_strided_slice %29 {offsets = [0, 2], sizes = [10, 900], strides = [1, 1]} : vector<10x964xbf16> to vector<10x900xbf16>
    %33 = vector.extract_strided_slice %29 {offsets = [0, 30], sizes = [10, 900], strides = [1, 1]} : vector<10x964xbf16> to vector<10x900xbf16>
    %34 = vector.extract_strided_slice %29 {offsets = [0, 31], sizes = [10, 900], strides = [1, 1]} : vector<10x964xbf16> to vector<10x900xbf16>
    %35 = vector.extract_strided_slice %29 {offsets = [0, 32], sizes = [10, 900], strides = [1, 1]} : vector<10x964xbf16> to vector<10x900xbf16>
    %36 = vector.extract_strided_slice %29 {offsets = [0, 60], sizes = [10, 900], strides = [1, 1]} : vector<10x964xbf16> to vector<10x900xbf16>
    %37 = vector.extract_strided_slice %29 {offsets = [0, 61], sizes = [10, 900], strides = [1, 1]} : vector<10x964xbf16> to vector<10x900xbf16>
    %38 = vector.extract_strided_slice %29 {offsets = [0, 62], sizes = [10, 900], strides = [1, 1]} : vector<10x964xbf16> to vector<10x900xbf16>
    %39 = tpu.concatenate %30, %31, %32, %33, %34, %35, %36, %37, %38 in 0 : vector<10x900xbf16>, vector<10x900xbf16>, vector<10x900xbf16>, vector<10x900xbf16>, vector<10x900xbf16>, vector<10x900xbf16>, vector<10x900xbf16>, vector<10x900xbf16>, vector<10x900xbf16> -> vector<90x900xbf16>
    %c0_12 = arith.constant 0 : index
    %c0_13 = arith.constant 0 : index
    %40 = vector.load %arg4[%c0_12, %c0_13] : memref<15x90xbf16, #tpu.memory_space<vmem>>, vector<15x90xbf16>
    %cst_14 = arith.constant dense<0.000000e+00> : vector<15x900xf32>
    %41 = tpu.matmul %40, %39, %cst_14 {dimension_numbers = #tpu.dot_dimension_numbers<[1], [0], [0], [1], [0, 0, 1, 1], [], []>} : vector<15x90xbf16>, vector<90x900xbf16>, vector<15x900xf32> -> vector<15x900xf32>
    %c0_15 = arith.constant 0 : index
    %c0_16 = arith.constant 0 : index
    %42 = vector.load %arg5[%c0_15, %c0_16] : memref<15x1xf32, #tpu.memory_space<vmem>>, vector<15x1xf32>
    %43 = vector.broadcast %42 : vector<15x1xf32> to vector<15x900xf32>
    %44 = arith.addf %41, %43 : vector<15x900xf32>
    %cst_17 = arith.constant 0.000000e+00 : f32
    %45 = vector.broadcast %cst_17 : f32 to vector<15x900xf32>
    %46 = arith.cmpf oge, %44, %45 : vector<15x900xf32>
    %cst_18 = arith.constant 0.00999999977 : f32
    %47 = vector.broadcast %cst_18 : f32 to vector<15x900xf32>
    %48 = arith.mulf %47, %44 : vector<15x900xf32>
    %49 = arith.select %46, %44, %48 : vector<15x900xi1>, vector<15x900xf32>
    %50 = arith.truncf %49 : vector<15x900xf32> to vector<15x900xbf16>
    %c0_19 = arith.constant 0 : index
    %c0_20 = arith.constant 0 : index
    %51 = vector.load %arg6[%c0_19, %c0_20] : memref<900x150xbf16, #tpu.memory_space<vmem>>, vector<900x150xbf16>
    %cst_21 = arith.constant dense<0.000000e+00> : vector<15x150xf32>
    %52 = tpu.matmul %50, %51, %cst_21 {dimension_numbers = #tpu.dot_dimension_numbers<[1], [0], [0], [1], [0, 0, 1, 1], [], []>} : vector<15x900xbf16>, vector<900x150xbf16>, vector<15x150xf32> -> vector<15x150xf32>
    %c0_22 = arith.constant 0 : index
    %c0_23 = arith.constant 0 : index
    %53 = vector.load %arg7[%c0_22, %c0_23] : memref<1x10xf32, #tpu.memory_space<vmem>>, vector<1x10xf32>
    %54 = vector.extract_strided_slice %52 {offsets = [0, 0], sizes = [1, 10], strides = [1, 1]} : vector<15x150xf32> to vector<1x10xf32>
    %55 = arith.addf %53, %54 : vector<1x10xf32>
    %56 = vector.extract_strided_slice %52 {offsets = [1, 10], sizes = [1, 10], strides = [1, 1]} : vector<15x150xf32> to vector<1x10xf32>
    %57 = arith.addf %55, %56 : vector<1x10xf32>
    %58 = vector.extract_strided_slice %52 {offsets = [2, 20], sizes = [1, 10], strides = [1, 1]} : vector<15x150xf32> to vector<1x10xf32>
    %59 = arith.addf %57, %58 : vector<1x10xf32>
    %60 = vector.extract_strided_slice %52 {offsets = [3, 30], sizes = [1, 10], strides = [1, 1]} : vector<15x150xf32> to vector<1x10xf32>
    %61 = arith.addf %59, %60 : vector<1x10xf32>
    %62 = vector.extract_strided_slice %52 {offsets = [4, 40], sizes = [1, 10], strides = [1, 1]} : vector<15x150xf32> to vector<1x10xf32>
    %63 = arith.addf %61, %62 : vector<1x10xf32>
    %64 = vector.extract_strided_slice %52 {offsets = [5, 50], sizes = [1, 10], strides = [1, 1]} : vector<15x150xf32> to vector<1x10xf32>
    %65 = arith.addf %63, %64 : vector<1x10xf32>
    %66 = vector.extract_strided_slice %52 {offsets = [6, 60], sizes = [1, 10], strides = [1, 1]} : vector<15x150xf32> to vector<1x10xf32>
    %67 = arith.addf %65, %66 : vector<1x10xf32>
    %68 = vector.extract_strided_slice %52 {offsets = [7, 70], sizes = [1, 10], strides = [1, 1]} : vector<15x150xf32> to vector<1x10xf32>
    %69 = arith.addf %67, %68 : vector<1x10xf32>
    %70 = vector.extract_strided_slice %52 {offsets = [8, 80], sizes = [1, 10], strides = [1, 1]} : vector<15x150xf32> to vector<1x10xf32>
    %71 = arith.addf %69, %70 : vector<1x10xf32>
    %72 = vector.extract_strided_slice %52 {offsets = [9, 90], sizes = [1, 10], strides = [1, 1]} : vector<15x150xf32> to vector<1x10xf32>
    %73 = arith.addf %71, %72 : vector<1x10xf32>
    %74 = vector.extract_strided_slice %52 {offsets = [10, 100], sizes = [1, 10], strides = [1, 1]} : vector<15x150xf32> to vector<1x10xf32>
    %75 = arith.addf %73, %74 : vector<1x10xf32>
    %76 = vector.extract_strided_slice %52 {offsets = [11, 110], sizes = [1, 10], strides = [1, 1]} : vector<15x150xf32> to vector<1x10xf32>
    %77 = arith.addf %75, %76 : vector<1x10xf32>
    %78 = vector.extract_strided_slice %52 {offsets = [12, 120], sizes = [1, 10], strides = [1, 1]} : vector<15x150xf32> to vector<1x10xf32>
    %79 = arith.addf %77, %78 : vector<1x10xf32>
    %80 = vector.extract_strided_slice %52 {offsets = [13, 130], sizes = [1, 10], strides = [1, 1]} : vector<15x150xf32> to vector<1x10xf32>
    %81 = arith.addf %79, %80 : vector<1x10xf32>
    %82 = vector.extract_strided_slice %52 {offsets = [14, 140], sizes = [1, 10], strides = [1, 1]} : vector<15x150xf32> to vector<1x10xf32>
    %83 = arith.addf %81, %82 : vector<1x10xf32>
    %c0_24 = arith.constant 0 : index
    %c0_25 = arith.constant 0 : index
    %c0_26 = arith.constant 0 : index
    %84 = vector.load %arg9[%c0_24, %c0_25, %c0_26] : memref<1x1x10xf32, #tpu.memory_space<vmem>>, vector<1x1x10xf32>
    %85 = vector.shape_cast %84 : vector<1x1x10xf32> to vector<1x10xf32>
    %86 = vector.shape_cast %83 : vector<1x10xf32> to vector<1x1x10xf32>
    tpu.vector_store %arg9[%c0_24, %c0_25, %c0_26], %86 {strides = array<i32>} : memref<1x1x10xf32, #tpu.memory_space<vmem>>, vector<1x1x10xf32>,
    return
  }
  func.func @transform_0(%arg0: i32) -> (i32, i32, i32) {
    %c0_i32 = arith.constant 0 : i32
    %c0_i32_0 = arith.constant 0 : i32
    %c0_i32_1 = arith.constant 0 : i32
    return %arg0, %c0_i32, %c0_i32_0 : i32, i32, i32
  }
  func.func @transform_1(%arg0: i32) -> (i32, i32) {
    %c0_i32 = arith.constant 0 : i32
    %c0_i32_0 = arith.constant 0 : i32
    %c0_i32_1 = arith.constant 0 : i32
    return %c0_i32, %c0_i32_0 : i32, i32
  }
  func.func @transform_2(%arg0: i32) -> (i32, i32) {
    %c0_i32 = arith.constant 0 : i32
    %c0_i32_0 = arith.constant 0 : i32
    %c0_i32_1 = arith.constant 0 : i32
    return %c0_i32, %c0_i32_0 : i32, i32
  }
  func.func @transform_3(%arg0: i32) -> (i32, i32) {
    %c0_i32 = arith.constant 0 : i32
    %c0_i32_0 = arith.constant 0 : i32
    %c0_i32_1 = arith.constant 0 : i32
    return %c0_i32, %c0_i32_0 : i32, i32
  }
  func.func @transform_4(%arg0: i32) -> (i32, i32) {
    %c0_i32 = arith.constant 0 : i32
    %c0_i32_0 = arith.constant 0 : i32
    %c0_i32_1 = arith.constant 0 : i32
    return %c0_i32, %c0_i32_0 : i32, i32
  }
  func.func @transform_5(%arg0: i32) -> (i32, i32) {
    %c0_i32 = arith.constant 0 : i32
    %c0_i32_0 = arith.constant 0 : i32
    %c0_i32_1 = arith.constant 0 : i32
    return %c0_i32, %c0_i32_0 : i32, i32
  }
  func.func @transform_6(%arg0: i32) -> (i32, i32) {
    %c0_i32 = arith.constant 0 : i32
    %c0_i32_0 = arith.constant 0 : i32
    %c0_i32_1 = arith.constant 0 : i32
    return %c0_i32, %c0_i32_0 : i32, i32
  }
  func.func @transform_7(%arg0: i32) -> (i32, i32) {
    %c0_i32 = arith.constant 0 : i32
    %c0_i32_0 = arith.constant 0 : i32
    %c0_i32_1 = arith.constant 0 : i32
    return %c0_i32, %c0_i32_0 : i32, i32
  }
  func.func @transform_8(%arg0: i32) -> (i32, i32, i32) {
    %c0_i32 = arith.constant 0 : i32
    %c0_i32_0 = arith.constant 0 : i32
    %c0_i32_1 = arith.constant 0 : i32
    return %arg0, %c0_i32, %c0_i32_0 : i32, i32, i32
  }
}

</mosaic_0001>

<llo_original>
// kernel: convnet_forward.1
$region0: #{convnet_forward.1}
  #allocation0 [shape = 'u32[]', space=smem, size = 0x4, offset = 0x4, fixed_abs, tag = 'smem constant byte address 0x4 - core index']
  #allocation1 [shape = 'u32[144,128]{1,0:T(1,128)}', space=vmem, size = 0x12000, scoped, tag = 'internal scratch']
  %s0 = inlined_call_operand.vmem [shape: bf16[2,3,964], index: 0, kind: input, shape index: {}]
  %s1 = inlined_call_operand.vmem [shape: bf16[10,27], index: 1, kind: input, shape index: {}]
  %s2 = inlined_call_operand.vmem [shape: f32[10,1], index: 2, kind: input, shape index: {}]
  %s3 = inlined_call_operand.vmem [shape: bf16[15,90], index: 3, kind: input, shape index: {}]
  %s4 = inlined_call_operand.vmem [shape: f32[15,1], index: 4, kind: input, shape index: {}]
  %s5 = inlined_call_operand.vmem [shape: bf16[900,150], index: 5, kind: input, shape index: {}]
  %s6 = inlined_call_operand.vmem [shape: f32[1,10], index: 6, kind: input, shape index: {}]
  %s7 = inlined_call_operand.vmem [shape: f32[1,900], index: 7, kind: input, shape index: {}]
  %s8 = inlined_call_operand.hbm [shape: f32[2,1,10], index: 8, kind: output, shape index: {}]
  %s9 = sld [smem:[#allocation0]]
  $region65: #{convnet_forward.1} parent=0
    _
  %s11 = ssub.s32 1, %s9
  %s12 = scalar_select 0, %s11, %s9
  $region1: #{convnet_forward.1} parent=0
    #allocation2 [shape = 'u8[1024]{0}', space=vmem, size = 0x400, scoped, tag = 'output window, operand 0']
    #allocation3 [shape = 's32[2]{0}', space=sflag, size = 0x8, scoped, tag = 'scoped memory for convnet_forward.1']
    %13 = vsyncpa [#allocation3], 0
    %s14 = scalar_lea.sflag [#allocation3], 1
    %15 = vsyncpa %s14, 0
    loop: start=0, step=1, limit=4
    $region2: #{convnet_forward.1} parent=1 // loop_pre_header
      _
    $region3: #{convnet_forward.1} parent=1 // loop_header
      %s17 = sphi 0, %s21
      %p18 = scmp.ge.s32.totalorder %s17, 4
      %s27 = sphi 0, %s29
      %s30 = sphi 0, %s27
      %s31 = sphi 0, %s30
      %s47 = sphi 0, %s31
      %s51 = sphi 0, %s51
      %s53 = sphi 0, %s51
      %s54 = sphi 0, %s53
      %s68 = sphi 0, %s54
      %s72 = sphi 0, %s72
      %s74 = sphi 0, %s72
      %s75 = sphi 0, %s74
      %s89 = sphi 0, %s75
      %s93 = sphi 0, %s93
      %s95 = sphi 0, %s93
      %s96 = sphi 0, %s95
      %s110 = sphi 0, %s96
      %s114 = sphi 0, %s114
      %s116 = sphi 0, %s114
      %s117 = sphi 0, %s116
      %s131 = sphi 0, %s117
      %s135 = sphi 0, %s135
      %s137 = sphi 0, %s135
      %s138 = sphi 0, %s137
      %s152 = sphi 0, %s138
      %s156 = sphi 0, %s156
      %s158 = sphi 0, %s156
      %s159 = sphi 0, %s158
      %s173 = sphi 0, %s159
      %s177 = sphi 0, %s177
      %s179 = sphi 0, %s177
      %s180 = sphi 0, %s179
      %s194 = sphi 0, %s180
      %s200 = sphi 0, %s202
      %s203 = sphi 0, %s200
      %s204 = sphi 0, %s203
      %s220 = sphi 0, %s204
    $region4: #{convnet_forward.1} parent=1 // loop_header_branch
      %20 = sbr.rel (%p18) target = $region8
    $region5: #{convnet_forward.1} parent=1 // loop_body
      %s22 = ssub.s32 %s17, 1
      %s23 = ssub.s32 %s17, 2
      %s24 = sadd.s32 %s17, 1
      %s25 = ssub.s32 %s17, %s24
      %p26 = scmp.eq.s32.totalorder %s25, 0
      %s28 = sadd.s32 %s27, 1
      %s29 = scalar_select %p26, %s27, %s28
      %p32 = pneg %p26
      %p33 = scmp.eq.s32.totalorder %s17, 1
      %p34 = por %p32, %p33
      %p35 = scmp.ne.s32.totalorder %s27, %s30
      %p36 = scmp.eq.s32.totalorder %s17, 0
      %p37 = por %p35, %p36
      %p38 = scmp.ne.s32.totalorder %s27, %s30
      %p39 = scmp.eq.s32.totalorder %s22, 1
      %p40 = por %p38, %p39
      %p41 = scmp.ne.s32.totalorder %s30, %s31
      %p42 = scmp.eq.s32.totalorder %s22, 0
      %p43 = por %p41, %p42
      %p44 = scmp.ne.s32.totalorder %s30, %s31
      %p45 = scmp.eq.s32.totalorder %s23, 1
      %p46 = por %p44, %p45
      %p48 = scmp.ne.s32.totalorder %s31, %s47
      %p49 = scmp.eq.s32.totalorder %s23, 0
      %p50 = por %p48, %p49
      %s52 = sadd.s32 %s51, 1
      %p55 = scmp.eq.s32.totalorder %s17, 1
      %p56 = scmp.ne.s32.totalorder %s51, %s53
      %p57 = scmp.eq.s32.totalorder %s17, 0
      %p58 = por %p56, %p57
      %p59 = scmp.ne.s32.totalorder %s51, %s53
      %p60 = scmp.eq.s32.totalorder %s22, 1
      %p61 = por %p59, %p60
      %p62 = scmp.ne.s32.totalorder %s53, %s54
      %p63 = scmp.eq.s32.totalorder %s22, 0
      %p64 = por %p62, %p63
      %p65 = scmp.ne.s32.totalorder %s53, %s54
      %p66 = scmp.eq.s32.totalorder %s23, 1
      %p67 = por %p65, %p66
      %p69 = scmp.ne.s32.totalorder %s54, %s68
      %p70 = scmp.eq.s32.totalorder %s23, 0
      %p71 = por %p69, %p70
      %s73 = sadd.s32 %s72, 1
      %p76 = scmp.eq.s32.totalorder %s17, 1
      %p77 = scmp.ne.s32.totalorder %s72, %s74
      %p78 = scmp.eq.s32.totalorder %s17, 0
      %p79 = por %p77, %p78
      %p80 = scmp.ne.s32.totalorder %s72, %s74
      %p81 = scmp.eq.s32.totalorder %s22, 1
      %p82 = por %p80, %p81
      %p83 = scmp.ne.s32.totalorder %s74, %s75
      %p84 = scmp.eq.s32.totalorder %s22, 0
      %p85 = por %p83, %p84
      %p86 = scmp.ne.s32.totalorder %s74, %s75
      %p87 = scmp.eq.s32.totalorder %s23, 1
      %p88 = por %p86, %p87
      %p90 = scmp.ne.s32.totalorder %s75, %s89
      %p91 = scmp.eq.s32.totalorder %s23, 0
      %p92 = por %p90, %p91
      %s94 = sadd.s32 %s93, 1
      %p97 = scmp.eq.s32.totalorder %s17, 1
      %p98 = scmp.ne.s32.totalorder %s93, %s95
      %p99 = scmp.eq.s32.totalorder %s17, 0
      %p100 = por %p98, %p99
      %p101 = scmp.ne.s32.totalorder %s93, %s95
      %p102 = scmp.eq.s32.totalorder %s22, 1
      %p103 = por %p101, %p102
      %p104 = scmp.ne.s32.totalorder %s95, %s96
      %p105 = scmp.eq.s32.totalorder %s22, 0
      %p106 = por %p104, %p105
      %p107 = scmp.ne.s32.totalorder %s95, %s96
      %p108 = scmp.eq.s32.totalorder %s23, 1
      %p109 = por %p107, %p108
      %p111 = scmp.ne.s32.totalorder %s96, %s110
      %p112 = scmp.eq.s32.totalorder %s23, 0
      %p113 = por %p111, %p112
      %s115 = sadd.s32 %s114, 1
      %p118 = scmp.eq.s32.totalorder %s17, 1
      %p119 = scmp.ne.s32.totalorder %s114, %s116
      %p120 = scmp.eq.s32.totalorder %s17, 0
      %p121 = por %p119, %p120
      %p122 = scmp.ne.s32.totalorder %s114, %s116
      %p123 = scmp.eq.s32.totalorder %s22, 1
      %p124 = por %p122, %p123
      %p125 = scmp.ne.s32.totalorder %s116, %s117
      %p126 = scmp.eq.s32.totalorder %s22, 0
      %p127 = por %p125, %p126
      %p128 = scmp.ne.s32.totalorder %s116, %s117
      %p129 = scmp.eq.s32.totalorder %s23, 1
      %p130 = por %p128, %p129
      %p132 = scmp.ne.s32.totalorder %s117, %s131
      %p133 = scmp.eq.s32.totalorder %s23, 0
      %p134 = por %p132, %p133
      %s136 = sadd.s32 %s135, 1
      %p139 = scmp.eq.s32.totalorder %s17, 1
      %p140 = scmp.ne.s32.totalorder %s135, %s137
      %p141 = scmp.eq.s32.totalorder %s17, 0
      %p142 = por %p140, %p141
      %p143 = scmp.ne.s32.totalorder %s135, %s137
      %p144 = scmp.eq.s32.totalorder %s22, 1
      %p145 = por %p143, %p144
      %p146 = scmp.ne.s32.totalorder %s137, %s138
      %p147 = scmp.eq.s32.totalorder %s22, 0
      %p148 = por %p146, %p147
      %p149 = scmp.ne.s32.totalorder %s137, %s138
      %p150 = scmp.eq.s32.totalorder %s23, 1
      %p151 = por %p149, %p150
      %p153 = scmp.ne.s32.totalorder %s138, %s152
      %p154 = scmp.eq.s32.totalorder %s23, 0
      %p155 = por %p153, %p154
      %s157 = sadd.s32 %s156, 1
      %p160 = scmp.eq.s32.totalorder %s17, 1
      %p161 = scmp.ne.s32.totalorder %s156, %s158
      %p162 = scmp.eq.s32.totalorder %s17, 0
      %p163 = por %p161, %p162
      %p164 = scmp.ne.s32.totalorder %s156, %s158
      %p165 = scmp.eq.s32.totalorder %s22, 1
      %p166 = por %p164, %p165
      %p167 = scmp.ne.s32.totalorder %s158, %s159
      %p168 = scmp.eq.s32.totalorder %s22, 0
      %p169 = por %p167, %p168
      %p170 = scmp.ne.s32.totalorder %s158, %s159
      %p171 = scmp.eq.s32.totalorder %s23, 1
      %p172 = por %p170, %p171
      %p174 = scmp.ne.s32.totalorder %s159, %s173
      %p175 = scmp.eq.s32.totalorder %s23, 0
      %p176 = por %p174, %p175
      %s178 = sadd.s32 %s177, 1
      %p181 = scmp.eq.s32.totalorder %s17, 1
      %p182 = scmp.ne.s32.totalorder %s177, %s179
      %p183 = scmp.eq.s32.totalorder %s17, 0
      %p184 = por %p182, %p183
      %p185 = scmp.ne.s32.totalorder %s177, %s179
      %p186 = scmp.eq.s32.totalorder %s22, 1
      %p187 = por %p185, %p186
      %p188 = scmp.ne.s32.totalorder %s179, %s180
      %p189 = scmp.eq.s32.totalorder %s22, 0
      %p190 = por %p188, %p189
      %p191 = scmp.ne.s32.totalorder %s179, %s180
      %p192 = scmp.eq.s32.totalorder %s23, 1
      %p193 = por %p191, %p192
      %p195 = scmp.ne.s32.totalorder %s180, %s194
      %p196 = scmp.eq.s32.totalorder %s23, 0
      %p197 = por %p195, %p196
      %s198 = ssub.s32 %s17, %s24
      %p199 = scmp.eq.s32.totalorder %s198, 0
      %s201 = sadd.s32 %s200, 1
      %s202 = scalar_select %p199, %s200, %s201
      %p205 = pneg %p199
      %p206 = scmp.eq.s32.totalorder %s17, 1
      %p207 = por %p205, %p206
      %p208 = scmp.ne.s32.totalorder %s200, %s203
      %p209 = scmp.eq.s32.totalorder %s17, 0
      %p210 = por %p208, %p209
      %p211 = scmp.ne.s32.totalorder %s200, %s203
      %p212 = scmp.eq.s32.totalorder %s22, 1
      %p213 = por %p211, %p212
      %p214 = scmp.ne.s32.totalorder %s203, %s204
      %p215 = scmp.eq.s32.totalorder %s22, 0
      %p216 = por %p214, %p215
      %p217 = scmp.ne.s32.totalorder %s203, %s204
      %p218 = scmp.eq.s32.totalorder %s23, 1
      %p219 = por %p217, %p218
      %p221 = scmp.ne.s32.totalorder %s204, %s220
      %p222 = scmp.eq.s32.totalorder %s23, 0
      %p223 = por %p221, %p222
      %p224 = scmp.le.s32.totalorder 1, %s17
      %p225 = scmp.lt.s32.totalorder %s17, 3
      %p226 = pnand %p224, %p225
      %p227 = pneg %p226
      // Predicated region
      $region9: #{convnet_forward.1} parent=5 // pred_check
        _
      $region10: #{convnet_forward.1} parent=5 // pred_check_branch
        %229 = sbr.rel (%p226) target = $region12
      $region11: #{convnet_forward.1} parent=5 // pred_region
        %s230 = ssub.s32 %s17, 1
        // Predicated region
        $region13: #{convnet_forward.1} parent=11 // pred_check
          %p231 = pneg %p64
        $region14: #{convnet_forward.1} parent=11 // pred_check_branch
          %233 = sbr.rel (%p231) target = $region16
        $region15: #{convnet_forward.1} parent=11 // pred_region
          _
        $region16: #{convnet_forward.1} parent=11 // pred_fallthru
          _
        // Predicated region
        $region17: #{convnet_forward.1} parent=11 // pred_check
          %p234 = pneg %p85
        $region18: #{convnet_forward.1} parent=11 // pred_check_branch
          %236 = sbr.rel (%p234) target = $region20
        $region19: #{convnet_forward.1} parent=11 // pred_region
          _
        $region20: #{convnet_forward.1} parent=11 // pred_fallthru
          _
        // Predicated region
        $region21: #{convnet_forward.1} parent=11 // pred_check
          %p237 = pneg %p106
        $region22: #{convnet_forward.1} parent=11 // pred_check_branch
          %239 = sbr.rel (%p237) target = $region24
        $region23: #{convnet_forward.1} parent=11 // pred_region
          _
        $region24: #{convnet_forward.1} parent=11 // pred_fallthru
          _
        // Predicated region
        $region25: #{convnet_forward.1} parent=11 // pred_check
          %p240 = pneg %p127
        $region26: #{convnet_forward.1} parent=11 // pred_check_branch
          %242 = sbr.rel (%p240) target = $region28
        $region27: #{convnet_forward.1} parent=11 // pred_region
          _
        $region28: #{convnet_forward.1} parent=11 // pred_fallthru
          _
        // Predicated region
        $region29: #{convnet_forward.1} parent=11 // pred_check
          %p243 = pneg %p148
        $region30: #{convnet_forward.1} parent=11 // pred_check_branch
          %245 = sbr.rel (%p243) target = $region32
        $region31: #{convnet_forward.1} parent=11 // pred_region
          _
        $region32: #{convnet_forward.1} parent=11 // pred_fallthru
          _
        // Predicated region
        $region33: #{convnet_forward.1} parent=11 // pred_check
          %p246 = pneg %p169
        $region34: #{convnet_forward.1} parent=11 // pred_check_branch
          %248 = sbr.rel (%p246) target = $region36
        $region35: #{convnet_forward.1} parent=11 // pred_region
          _
        $region36: #{convnet_forward.1} parent=11 // pred_fallthru
          _
        // Predicated region
        $region37: #{convnet_forward.1} parent=11 // pred_check
          %p249 = pneg %p190
        $region38: #{convnet_forward.1} parent=11 // pred_check_branch
          %251 = sbr.rel (%p249) target = $region40
        $region39: #{convnet_forward.1} parent=11 // pred_region
          _
        $region40: #{convnet_forward.1} parent=11 // pred_fallthru
          _
      $region12: #{convnet_forward.1} parent=5 // pred_fallthru
        _
      %p252 = scmp.lt.s32.totalorder %s17, 2
      // Predicated region
      $region41: #{convnet_forward.1} parent=5 // pred_check
        %p253 = pneg %p252
      $region42: #{convnet_forward.1} parent=5 // pred_check_branch
        %255 = sbr.rel (%p253) target = $region44
      $region43: #{convnet_forward.1} parent=5 // pred_region
        // Predicated region
        $region45: #{convnet_forward.1} parent=43 // pred_check
          %p256 = pneg %p37
        $region46: #{convnet_forward.1} parent=43 // pred_check_branch
          %258 = sbr.rel (%p256) target = $region48
        $region47: #{convnet_forward.1} parent=43 // pred_region
          %p259 = scmp.lt.s32.totalorder %s17, 1
          %s260 = scalar_select %p259, %s17, 1
          %s261 = smul.addr %s260, 8
          %s262 = smul.addr %s261, 2
          %s263 = scalar_lea.vmem %s0, %s262
        $region48: #{convnet_forward.1} parent=43 // pred_fallthru
          _
      $region44: #{convnet_forward.1} parent=5 // pred_fallthru
        _
      %p264 = scmp.le.s32.totalorder 1, %s17
      %p265 = scmp.lt.s32.totalorder %s17, 3
      %p266 = pnand %p264, %p265
      %p267 = pneg %p266
      // Predicated region
      $region49: #{convnet_forward.1} parent=5 // pred_check
        _
      $region50: #{convnet_forward.1} parent=5 // pred_check_branch
        %269 = sbr.rel (%p266) target = $region52
      $region51: #{convnet_forward.1} parent=5 // pred_region
        %s270 = ssub.s32 %s17, 1
        %p271 = scmp.lt.s32.totalorder %s22, 1
        %s272 = scalar_select %p271, %s22, 1
        %s273 = smul.addr %s272, 8
        %s274 = smul.addr %s273, 2
        %s275 = scalar_lea.vmem %s0, %s274
        %p276 = pneg %p43
        %p277 = pneg %p40
        %p278 = pneg %p64
        %p279 = pneg %p61
        %p280 = pneg %p85
        %p281 = pneg %p82
        %p282 = pneg %p106
        %p283 = pneg %p103
        %p284 = pneg %p127
        %p285 = pneg %p124
        %p286 = pneg %p148
        %p287 = pneg %p145
        %p288 = pneg %p169
        %p289 = pneg %p166
        %p290 = pneg %p190
        %p291 = pneg %p187
        %p292 = pneg %p216
        %p293 = pneg %p213
        %s294 = sand.u32 %s203, 1
        %s295 = scalar_lea.sflag [#allocation3], %s294
        %s296 = sand.u32 %s203, 1
        %s297 = scalar_lea.vmem [#allocation2], %s296
        %p298 = scmp.lt.s32.totalorder %s22, 1
        %s299 = scalar_select %p298, %s22, 1
        %s300 = smul.addr %s299, 8
        %s301 = smul.addr %s300, 2
        %s302 = scalar_lea.vmem %s0, %s301
        %v304 = vld [vmem:[%s302] sm:$0xff]
        %v305 = vld [vmem:[%s302 + $0x8] sm:$0xff]
        %v306 = vld [vmem:[%s7] sm:$0xff]
        %v309 = vcombine.high %v304, %v304
        %v311 = vunpack.c.l.s4 1983009808
        %v312 = vunpack.c.0.s8 %v311
        %v313 = vlaneseq
        %v314 = vshrl.u32 %v313, 7
        %v315 = vsub.s32 %v312, %v314
        %v316 = vrot.slane %v304, %v315
        %v318 = vunpack.c.l.s4 1983009808
        %v319 = vunpack.c.0.s8 %v318
        %v320 = vlaneseq
        %v321 = vshrl.u32 %v320, 7
        %v322 = vsub.s32 %v319, %v321
        %v323 = vrot.slane %v309, %v322
        %v324 = vcombine.high %v316, %v316
        %v325 = vcombine.high %v323, %v323
        %v326 = vcombine.high %v305, %v305
        %v328 = vunpack.c.l.s4 1983009808
        %v329 = vunpack.c.0.s8 %v328
        %v330 = vlaneseq
        %v331 = vshrl.u32 %v330, 7
        %v332 = vsub.s32 %v329, %v331
        %v333 = vrot.slane %v305, %v332
        %v335 = vunpack.c.l.s4 1983009808
        %v336 = vunpack.c.0.s8 %v335
        %v337 = vlaneseq
        %v338 = vshrl.u32 %v337, 7
        %v339 = vsub.s32 %v336, %v338
        %v340 = vrot.slane %v326, %v339
        %v341 = vcombine.high %v333, %v333
        %v342 = vcombine.high %v340, %v340
        %v352 = vshrl.u32 %v316, 16
        %v354 = vrot.slane %v352, 6
        %v355 = vshll.u32 %v316, 16
        %v357 = vrot.slane %v355, 7
        %v358 = vor.u32 %v354, %v357
        %v360 = vshrl.u32 %v324, 16
        %v362 = vrot.slane %v360, 6
        %v363 = vshll.u32 %v324, 16
        %v365 = vrot.slane %v363, 7
        %v366 = vor.u32 %v362, %v365
        %v368 = vshrl.u32 %v323, 16
        %v370 = vrot.slane %v368, 6
        %v371 = vshll.u32 %v323, 16
        %v373 = vrot.slane %v371, 7
        %v374 = vor.u32 %v370, %v373
        %v376 = vshrl.u32 %v325, 16
        %v378 = vrot.slane %v376, 6
        %v379 = vshll.u32 %v325, 16
        %v381 = vrot.slane %v379, 7
        %v382 = vor.u32 %v378, %v381
        %v384 = vshrl.u32 %v333, 16
        %v386 = vrot.slane %v384, 6
        %v387 = vshll.u32 %v333, 16
        %v389 = vrot.slane %v387, 7
        %v390 = vor.u32 %v386, %v389
        %v392 = vshrl.u32 %v341, 16
        %v394 = vrot.slane %v392, 6
        %v395 = vshll.u32 %v341, 16
        %v397 = vrot.slane %v395, 7
        %v398 = vor.u32 %v394, %v397
        %v400 = vshrl.u32 %v340, 16
        %v402 = vrot.slane %v400, 6
        %v403 = vshll.u32 %v340, 16
        %v405 = vrot.slane %v403, 7
        %v406 = vor.u32 %v402, %v405
        %v408 = vshrl.u32 %v342, 16
        %v410 = vrot.slane %v408, 6
        %v411 = vshll.u32 %v342, 16
        %v413 = vrot.slane %v411, 7
        %v414 = vor.u32 %v410, %v413
        %415 = vrot.lane.b32.xlu0 %v358, 127
        %v416 = vpop.permute.xlu0 %415
        %417 = vrot.lane.b32.xlu0 %v366, 127
        %v418 = vpop.permute.xlu0 %417
        %419 = vrot.lane.b32.xlu0 %v374, 127
        %v420 = vpop.permute.xlu0 %419
        %421 = vrot.lane.b32.xlu0 %v382, 127
        %v422 = vpop.permute.xlu0 %421
        %423 = vrot.lane.b32.xlu0 %v390, 127
        %v424 = vpop.permute.xlu0 %423
        %425 = vrot.lane.b32.xlu0 %v398, 127
        %v426 = vpop.permute.xlu0 %425
        %427 = vrot.lane.b32.xlu0 %v406, 127
        %v428 = vpop.permute.xlu0 %427
        %429 = vrot.lane.b32.xlu0 %v414, 127
        %v430 = vpop.permute.xlu0 %429
        %vm431 = vcmask 1039360
        %v432 = vsel %vm431, %v416, %v418
        %v433 = vsel %vm431, %v418, %v420
        %v434 = vsel %vm431, %v420, %v422
        %v435 = vsel %vm431, %v422, %v424
        %v436 = vsel %vm431, %v424, %v426
        %v437 = vsel %vm431, %v426, %v428
        %v438 = vsel %vm431, %v428, %v430
        %v447 = vrot.slane %v316, 5
        %v448 = vrot.slane %v324, 5
        %v449 = vrot.slane %v323, 5
        %v450 = vrot.slane %v325, 5
        %v451 = vrot.slane %v333, 5
        %v452 = vrot.slane %v341, 5
        %v453 = vrot.slane %v340, 5
        %v454 = vrot.slane %v342, 5
        %455 = vrot.lane.b32.xlu0 %v447, 126
        %v456 = vpop.permute.xlu0 %455
        %457 = vrot.lane.b32.xlu0 %v448, 126
        %v458 = vpop.permute.xlu0 %457
        %459 = vrot.lane.b32.xlu0 %v449, 126
        %v460 = vpop.permute.xlu0 %459
        %461 = vrot.lane.b32.xlu0 %v450, 126
        %v462 = vpop.permute.xlu0 %461
        %463 = vrot.lane.b32.xlu0 %v451, 126
        %v464 = vpop.permute.xlu0 %463
        %465 = vrot.lane.b32.xlu0 %v452, 126
        %v466 = vpop.permute.xlu0 %465
        %467 = vrot.lane.b32.xlu0 %v453, 126
        %v468 = vpop.permute.xlu0 %467
        %469 = vrot.lane.b32.xlu0 %v454, 126
        %v470 = vpop.permute.xlu0 %469
        %vm471 = vcmask 1031168
        %v472 = vsel %vm471, %v456, %v458
        %v473 = vsel %vm471, %v458, %v460
        %v474 = vsel %vm471, %v460, %v462
        %v475 = vsel %vm471, %v462, %v464
        %v476 = vsel %vm471, %v464, %v466
        %v477 = vsel %vm471, %v466, %v468
        %v478 = vsel %vm471, %v468, %v470
        %v479 = vrot.slane %v352, 3
        %v480 = vrot.slane %v355, 4
        %v481 = vor.u32 %v479, %v480
        %v482 = vrot.slane %v360, 3
        %v483 = vrot.slane %v363, 4
        %v484 = vor.u32 %v482, %v483
        %v485 = vrot.slane %v368, 3
        %v486 = vrot.slane %v371, 4
        %v487 = vor.u32 %v485, %v486
        %v488 = vrot.slane %v376, 3
        %v489 = vrot.slane %v379, 4
        %v490 = vor.u32 %v488, %v489
        %v491 = vrot.slane %v384, 3
        %v492 = vrot.slane %v387, 4
        %v493 = vor.u32 %v491, %v492
        %v494 = vrot.slane %v392, 3
        %v495 = vrot.slane %v395, 4
        %v496 = vor.u32 %v494, %v495
        %v497 = vrot.slane %v400, 3
        %v498 = vrot.slane %v403, 4
        %v499 = vor.u32 %v497, %v498
        %v500 = vrot.slane %v408, 3
        %v501 = vrot.slane %v411, 4
        %v502 = vor.u32 %v500, %v501
        %503 = vrot.lane.b32.xlu0 %v481, 98
        %v504 = vpop.permute.xlu0 %503
        %505 = vrot.lane.b32.xlu0 %v484, 98
        %v506 = vpop.permute.xlu0 %505
        %507 = vrot.lane.b32.xlu0 %v487, 98
        %v508 = vpop.permute.xlu0 %507
        %509 = vrot.lane.b32.xlu0 %v490, 98
        %v510 = vpop.permute.xlu0 %509
        %511 = vrot.lane.b32.xlu0 %v493, 98
        %v512 = vpop.permute.xlu0 %511
        %513 = vrot.lane.b32.xlu0 %v496, 98
        %v514 = vpop.permute.xlu0 %513
        %515 = vrot.lane.b32.xlu0 %v499, 98
        %v516 = vpop.permute.xlu0 %515
        %517 = vrot.lane.b32.xlu0 %v502, 98
        %v518 = vpop.permute.xlu0 %517
        %vm519 = vcmask 801792
        %v520 = vsel %vm519, %v504, %v506
        %v521 = vsel %vm519, %v506, %v508
        %v522 = vsel %vm519, %v508, %v510
        %v523 = vsel %vm519, %v510, %v512
        %v524 = vsel %vm519, %v512, %v514
        %v525 = vsel %vm519, %v514, %v516
        %v526 = vsel %vm519, %v516, %v518
        %v535 = vcombine.low %v304, %v304
        %v537 = vunpack.c.l.s4 1983009808
        %v538 = vunpack.c.0.s8 %v537
        %v539 = vlaneseq
        %v540 = vshrl.u32 %v539, 7
        %v541 = vsub.s32 %v538, %v540
        %v542 = vrot.slane %v535, %v541
        %v543 = vcombine.low %v542, %v542
        %v544 = vcombine.low %v316, %v316
        %v545 = vcombine.low %v305, %v305
        %v547 = vunpack.c.l.s4 1983009808
        %v548 = vunpack.c.0.s8 %v547
        %v549 = vlaneseq
        %v550 = vshrl.u32 %v549, 7
        %v551 = vsub.s32 %v548, %v550
        %v552 = vrot.slane %v545, %v551
        %v553 = vcombine.low %v552, %v552
        %v554 = vcombine.low %v333, %v333
        %555 = vrot.lane.b32.xlu0 %v543, 97
        %v556 = vpop.permute.xlu0 %555
        %557 = vrot.lane.b32.xlu0 %v542, 97
        %v558 = vpop.permute.xlu0 %557
        %559 = vrot.lane.b32.xlu0 %v544, 97
        %v560 = vpop.permute.xlu0 %559
        %561 = vrot.lane.b32.xlu0 %v316, 97
        %v562 = vpop.permute.xlu0 %561
        %563 = vrot.lane.b32.xlu0 %v553, 97
        %v564 = vpop.permute.xlu0 %563
        %565 = vrot.lane.b32.xlu0 %v552, 97
        %v566 = vpop.permute.xlu0 %565
        %567 = vrot.lane.b32.xlu0 %v554, 97
        %v568 = vpop.permute.xlu0 %567
        %569 = vrot.lane.b32.xlu0 %v333, 97
        %v570 = vpop.permute.xlu0 %569
        %vm571 = vcmask 793600
        %v572 = vsel %vm571, %v556, %v558
        %v573 = vsel %vm571, %v558, %v560
        %v574 = vsel %vm571, %v560, %v562
        %v575 = vsel %vm571, %v562, %v564
        %v576 = vsel %vm571, %v564, %v566
        %v577 = vsel %vm571, %v566, %v568
        %v578 = vsel %vm571, %v568, %v570
        %v579 = vrot.slane %v355, 1
        %v580 = vrot.slane %v363, 1
        %v581 = vrot.slane %v371, 1
        %v582 = vrot.slane %v379, 1
        %v583 = vrot.slane %v387, 1
        %v584 = vrot.slane %v395, 1
        %v585 = vrot.slane %v403, 1
        %v586 = vrot.slane %v411, 1
        %v587 = vor.u32 %v352, %v579
        %v588 = vor.u32 %v360, %v580
        %v589 = vor.u32 %v368, %v581
        %v590 = vor.u32 %v376, %v582
        %v591 = vor.u32 %v384, %v583
        %v592 = vor.u32 %v392, %v584
        %v593 = vor.u32 %v400, %v585
        %v594 = vor.u32 %v408, %v586
        %595 = vrot.lane.b32.xlu0 %v579, 96
        %v596 = vpop.permute.xlu0 %595
        %597 = vrot.lane.b32.xlu0 %v580, 96
        %v598 = vpop.permute.xlu0 %597
        %599 = vrot.lane.b32.xlu0 %v581, 96
        %v600 = vpop.permute.xlu0 %599
        %601 = vrot.lane.b32.xlu0 %v582, 96
        %v602 = vpop.permute.xlu0 %601
        %603 = vrot.lane.b32.xlu0 %v583, 96
        %v604 = vpop.permute.xlu0 %603
        %605 = vrot.lane.b32.xlu0 %v584, 96
        %v606 = vpop.permute.xlu0 %605
        %607 = vrot.lane.b32.xlu0 %v585, 96
        %v608 = vpop.permute.xlu0 %607
        %609 = vrot.lane.b32.xlu0 %v586, 96
        %v610 = vpop.permute.xlu0 %609
        %611 = vrot.lane.b32.xlu0 %v587, 96
        %v612 = vpop.permute.xlu0 %611
        %613 = vrot.lane.b32.xlu0 %v588, 96
        %v614 = vpop.permute.xlu0 %613
        %615 = vrot.lane.b32.xlu0 %v589, 96
        %v616 = vpop.permute.xlu0 %615
        %617 = vrot.lane.b32.xlu0 %v590, 96
        %v618 = vpop.permute.xlu0 %617
        %619 = vrot.lane.b32.xlu0 %v591, 96
        %v620 = vpop.permute.xlu0 %619
        %621 = vrot.lane.b32.xlu0 %v592, 96
        %v622 = vpop.permute.xlu0 %621
        %623 = vrot.lane.b32.xlu0 %v593, 96
        %v624 = vpop.permute.xlu0 %623
        %625 = vrot.lane.b32.xlu0 %v594, 96
        %v626 = vpop.permute.xlu0 %625
        %vm627 = vcmask 785408
        %v628 = vsel %vm627, %v596, %v598
        %v629 = vsel %vm627, %v598, %v600
        %v630 = vsel %vm627, %v600, %v602
        %v631 = vsel %vm627, %v602, %v604
        %v632 = vsel %vm627, %v604, %v606
        %v633 = vsel %vm627, %v606, %v608
        %v634 = vsel %vm627, %v608, %v610
        %v635 = vsel %vm627, %v612, %v614
        %v636 = vsel %vm627, %v614, %v616
        %v637 = vsel %vm627, %v616, %v618
        %v638 = vsel %vm627, %v618, %v620
        %v639 = vsel %vm627, %v620, %v622
        %v640 = vsel %vm627, %v622, %v624
        %v641 = vsel %vm627, %v624, %v626
        %v650 = vrot.slane %v316, 7
        %v651 = vrot.slane %v324, 7
        %v652 = vrot.slane %v323, 7
        %v653 = vrot.slane %v325, 7
        %v654 = vrot.slane %v333, 7
        %v655 = vrot.slane %v341, 7
        %v656 = vrot.slane %v340, 7
        %v657 = vrot.slane %v342, 7
        %658 = vrot.lane.b32.xlu0 %v650, 68
        %v659 = vpop.permute.xlu0 %658
        %660 = vrot.lane.b32.xlu0 %v651, 68
        %v661 = vpop.permute.xlu0 %660
        %662 = vrot.lane.b32.xlu0 %v652, 68
        %v663 = vpop.permute.xlu0 %662
        %664 = vrot.lane.b32.xlu0 %v653, 68
        %v665 = vpop.permute.xlu0 %664
        %666 = vrot.lane.b32.xlu0 %v654, 68
        %v667 = vpop.permute.xlu0 %666
        %668 = vrot.lane.b32.xlu0 %v655, 68
        %v669 = vpop.permute.xlu0 %668
        %670 = vrot.lane.b32.xlu0 %v656, 68
        %v671 = vpop.permute.xlu0 %670
        %672 = vrot.lane.b32.xlu0 %v657, 68
        %v673 = vpop.permute.xlu0 %672
        %vm674 = vcmask 556032
        %v675 = vsel %vm674, %v659, %v661
        %v676 = vsel %vm674, %v661, %v663
        %v677 = vsel %vm674, %v663, %v665
        %v678 = vsel %vm674, %v665, %v667
        %v679 = vsel %vm674, %v667, %v669
        %v680 = vsel %vm674, %v669, %v671
        %v681 = vsel %vm674, %v671, %v673
        %v682 = vrot.slane %v352, 5
        %v683 = vrot.slane %v355, 6
        %v684 = vor.u32 %v682, %v683
        %v685 = vrot.slane %v360, 5
        %v686 = vrot.slane %v363, 6
        %v687 = vor.u32 %v685, %v686
        %v688 = vrot.slane %v368, 5
        %v689 = vrot.slane %v371, 6
        %v690 = vor.u32 %v688, %v689
        %v691 = vrot.slane %v376, 5
        %v692 = vrot.slane %v379, 6
        %v693 = vor.u32 %v691, %v692
        %v694 = vrot.slane %v384, 5
        %v695 = vrot.slane %v387, 6
        %v696 = vor.u32 %v694, %v695
        %v697 = vrot.slane %v392, 5
        %v698 = vrot.slane %v395, 6
        %v699 = vor.u32 %v697, %v698
        %v700 = vrot.slane %v400, 5
        %v701 = vrot.slane %v403, 6
        %v702 = vor.u32 %v700, %v701
        %v703 = vrot.slane %v408, 5
        %v704 = vrot.slane %v411, 6
        %v705 = vor.u32 %v703, %v704
        %706 = vrot.lane.b32.xlu0 %v684, 67
        %v707 = vpop.permute.xlu0 %706
        %708 = vrot.lane.b32.xlu0 %v687, 67
        %v709 = vpop.permute.xlu0 %708
        %710 = vrot.lane.b32.xlu0 %v690, 67
        %v711 = vpop.permute.xlu0 %710
        %712 = vrot.lane.b32.xlu0 %v693, 67
        %v713 = vpop.permute.xlu0 %712
        %714 = vrot.lane.b32.xlu0 %v696, 67
        %v715 = vpop.permute.xlu0 %714
        %716 = vrot.lane.b32.xlu0 %v699, 67
        %v717 = vpop.permute.xlu0 %716
        %718 = vrot.lane.b32.xlu0 %v702, 67
        %v719 = vpop.permute.xlu0 %718
        %720 = vrot.lane.b32.xlu0 %v705, 67
        %v721 = vpop.permute.xlu0 %720
        %vm722 = vcmask 547840
        %v723 = vsel %vm722, %v707, %v709
        %v724 = vsel %vm722, %v709, %v711
        %v725 = vsel %vm722, %v711, %v713
        %v726 = vsel %vm722, %v713, %v715
        %v727 = vsel %vm722, %v715, %v717
        %v728 = vsel %vm722, %v717, %v719
        %v729 = vsel %vm722, %v719, %v721
        %v738 = vcombine.low %v323, %v323
        %v739 = vcombine.low %v340, %v340
        %740 = vrot.lane.b32.xlu0 %v544, 66
        %v741 = vpop.permute.xlu0 %740
        %742 = vrot.lane.b32.xlu0 %v316, 66
        %v743 = vpop.permute.xlu0 %742
        %744 = vrot.lane.b32.xlu0 %v738, 66
        %v745 = vpop.permute.xlu0 %744
        %746 = vrot.lane.b32.xlu0 %v323, 66
        %v747 = vpop.permute.xlu0 %746
        %748 = vrot.lane.b32.xlu0 %v554, 66
        %v749 = vpop.permute.xlu0 %748
        %750 = vrot.lane.b32.xlu0 %v333, 66
        %v751 = vpop.permute.xlu0 %750
        %752 = vrot.lane.b32.xlu0 %v739, 66
        %v753 = vpop.permute.xlu0 %752
        %754 = vrot.lane.b32.xlu0 %v340, 66
        %v755 = vpop.permute.xlu0 %754
        %vm756 = vcmask 539648
        %v757 = vsel %vm756, %v741, %v743
        %v758 = vsel %vm756, %v743, %v745
        %v759 = vsel %vm756, %v745, %v747
        %v760 = vsel %vm756, %v747, %v749
        %v761 = vsel %vm756, %v749, %v751
        %v762 = vsel %vm756, %v751, %v753
        %v763 = vsel %vm756, %v753, %v755
        %vm764 = vcmask 1041408
        %vm765 = vsmask.f32 1280
        %vm766 = vmand %vm764, %vm765
        %v767 = vsel %vm766, %v316, %v432
        %v768 = vsel %vm766, %v324, %v433
        %v769 = vsel %vm766, %v323, %v434
        %v770 = vsel %vm766, %v325, %v435
        %v771 = vsel %vm766, %v333, %v436
        %v772 = vsel %vm766, %v341, %v437
        %v773 = vsel %vm766, %v340, %v438
        %v774 = vsel %vm766, %v342, %v430
        %vm775 = vcmask 1042432
        %v778 = vsel %vm775, %v767, %v472
        %v782 = vsel %vm775, %v768, %v473
        %v786 = vsel %vm775, %v769, %v474
        %v790 = vsel %vm775, %v770, %v475
        %v794 = vsel %vm775, %v771, %v476
        %v798 = vsel %vm775, %v772, %v477
        %v802 = vsel %vm775, %v773, %v478
        %v806 = vsel %vm775, %v774, %v470
        %vm808 = vcmask 1044480
        %vm809 = vsmask.f32 4352
        %vm810 = vmand %vm808, %vm809
        %v811 = vsel %vm810, %v778, %v520
        %v812 = vsel %vm810, %v782, %v521
        %v813 = vsel %vm810, %v786, %v522
        %v814 = vsel %vm810, %v790, %v523
        %v815 = vsel %vm810, %v794, %v524
        %v816 = vsel %vm810, %v798, %v525
        %v817 = vsel %vm810, %v802, %v526
        %v818 = vsel %vm810, %v806, %v518
        %vm819 = vcmask 1045504
        %v822 = vsel %vm819, %v811, %v572
        %v826 = vsel %vm819, %v812, %v573
        %v830 = vsel %vm819, %v813, %v574
        %v834 = vsel %vm819, %v814, %v575
        %v838 = vsel %vm819, %v815, %v576
        %v842 = vsel %vm819, %v816, %v577
        %v846 = vsel %vm819, %v817, %v578
        %v850 = vsel %vm819, %v818, %v570
        %vm852 = vcmask 1047552
        %vm853 = vsmask.f32 7424
        %vm854 = vmand %vm852, %vm853
        %v855 = vsel %vm854, %v822, %v628
        %v856 = vsel %vm854, %v826, %v629
        %v857 = vsel %vm854, %v830, %v630
        %v858 = vsel %vm854, %v834, %v631
        %v859 = vsel %vm854, %v838, %v632
        %v860 = vsel %vm854, %v842, %v633
        %v861 = vsel %vm854, %v846, %v634
        %v862 = vsel %vm854, %v850, %v610
        %vm863 = vcmask 1040384
        %v866 = vsel %vm863, %v635, %v675
        %v870 = vsel %vm863, %v636, %v676
        %v874 = vsel %vm863, %v637, %v677
        %v878 = vsel %vm863, %v638, %v678
        %v882 = vsel %vm863, %v639, %v679
        %v886 = vsel %vm863, %v640, %v680
        %v890 = vsel %vm863, %v641, %v681
        %v894 = vsel %vm863, %v626, %v673
        %vm896 = vcmask 1042432
        %vm897 = vsmask.f32 2304
        %vm898 = vmand %vm896, %vm897
        %v899 = vsel %vm898, %v866, %v723
        %v900 = vsel %vm898, %v870, %v724
        %v901 = vsel %vm898, %v874, %v725
        %v902 = vsel %vm898, %v878, %v726
        %v903 = vsel %vm898, %v882, %v727
        %v904 = vsel %vm898, %v886, %v728
        %v905 = vsel %vm898, %v890, %v729
        %v906 = vsel %vm898, %v894, %v721
        %vm907 = vcmask 1043456
        %v910 = vsel %vm907, %v899, %v757
        %v913 = vsel %vm907, %v900, %v758
        %v916 = vsel %vm907, %v901, %v759
        %v919 = vsel %vm907, %v902, %v760
        %v922 = vsel %vm907, %v903, %v761
        %v925 = vsel %vm907, %v904, %v762
        %v928 = vsel %vm907, %v905, %v763
        %v931 = vsel %vm907, %v906, %v755
        %v932 = vld [vmem:[%s1] sm:$0xf]
        %v933 = vld [vmem:[%s1 + $0x4] sm:$0x1]
        %v934 = vld [vmem:[%s2] sm:$0xff]
        %v935 = vld [vmem:[%s2 + $0x8] sm:$0x3]
        %937 = vset.pattern.permute.xlu0 0
        %938 = vperm.xlu0 %937, %v934
        %v939 = vpop.permute.xlu0 %938
        %942 = vset.pattern.permute.xlu0 0
        %943 = vperm.xlu0 %942, %v935
        %v944 = vpop.permute.xlu0 %943
        %v948 = vunpack.c.l.b16 %v932
        %v949 = vunpack.c.l.b16 %v933
        %v950 = vpack.c.b16 %v949, %v948
        %vm951 = vcmask 220160
        %v953 = vsel %vm951, %v950, 0
        %vm955 = vcmask 1044480
        %v956 = vsel %vm955, 4294967295, 65535
        %v957 = vsel %vm819, %v956, 0
        %v958 = vand.u32 %v910, %v957
        %v960 = vand.u32 %v913, %v957
        %v962 = vand.u32 %v916, %v957
        %v964 = vand.u32 %v919, %v957
        %v966 = vand.u32 %v922, %v957
        %v968 = vand.u32 %v925, %v957
        %v970 = vand.u32 %v928, %v957
        %v972 = vand.u32 %v931, %v957
        %974 = vmatprep.subr.bf16.mxu0 %v856
        %975 = vmatpush1.bf16.msra.mxu0 %v855
        %976 = vmatprep.subr.bf16.mxu0 %v960
        %977 = vmatpush1.bf16.msra.mxu0 %v958
        %978 = vmatprep.subr.bf16.mxu0 0
        %979 = vmatpush1.bf16.msra.mxu0 0
        %980 = vmatprep.subr.bf16.mxu0 0
        %981 = vmatpush1.bf16.msra.mxu0 0
        %982 = vmatprep.subr.bf16.mxu0 0
        %983 = vmatpush1.bf16.msra.mxu0 0
        %984 = vmatprep.subr.bf16.mxu0 0
        %985 = vmatpush1.bf16.msra.mxu0 0
        %986 = vmatprep.subr.bf16.mxu0 0
        %987 = vmatpush1.bf16.msra.mxu0 0
        %988 = vmatprep.subr.bf16.mxu0 0
        %989 = vmatpush1.bf16.msra.mxu0 0
        %990 = vmatprep.subr.bf16.mxu0 0
        %991 = vmatpush1.bf16.msra.mxu0 0
        %992 = vmatprep.subr.bf16.mxu0 0
        %993 = vmatpush1.bf16.msra.mxu0 0
        %994 = vmatprep.subr.bf16.mxu0 0
        %995 = vmatpush1.bf16.msra.mxu0 0
        %996 = vmatprep.subr.bf16.mxu0 0
        %997 = vmatpush1.bf16.msra.mxu0 0
        %998 = vmatprep.subr.bf16.mxu0 0
        %999 = vmatpush1.bf16.msra.mxu0 0
        %1000 = vmatprep.subr.bf16.mxu0 0
        %1001 = vmatpush1.bf16.msra.mxu0 0
        %1002 = vmatprep.subr.bf16.mxu0 0
        %1003 = vmatpush1.bf16.msra.mxu0 0
        %1004 = vmatprep.subr.bf16.mxu0 0
        %1005 = vmatpush1.bf16.msra.mxu0 0
        %1006 = vmatprep.mubr.bf16.mxu0 0
        %1007 = vmatmul.mubr.bf16.gmra.mrb[0].mxu0 %v953
        %v1008 = vpop.f32.mrb[0].mxu0
        %v1009 = vadd.f32 %v939, %v1008
        %v1010 = vpop.f32.mrb[0].mxu0
        %v1011 = vadd.f32 %v939, %v1010
        %v1012 = vpop.f32.mrb[0].mxu0
        %v1013 = vadd.f32 %v944, %v1012
        %v1014 = vpop.f32.mrb[0].mxu0
        %v1015 = vadd.f32 %v944, %v1014
        %1016 = vdwg.mxu0
        %1017 = vmatprep.subr.bf16.mxu0 %v858
        %1018 = vmatpush1.bf16.msra.mxu0 %v857
        %1019 = vmatprep.subr.bf16.mxu0 %v964
        %1020 = vmatpush1.bf16.msra.mxu0 %v962
        %1021 = vmatprep.subr.bf16.mxu0 0
        %1022 = vmatpush1.bf16.msra.mxu0 0
        %1023 = vmatprep.subr.bf16.mxu0 0
        %1024 = vmatpush1.bf16.msra.mxu0 0
        %1025 = vmatprep.subr.bf16.mxu0 0
        %1026 = vmatpush1.bf16.msra.mxu0 0
        %1027 = vmatprep.subr.bf16.mxu0 0
        %1028 = vmatpush1.bf16.msra.mxu0 0
        %1029 = vmatprep.subr.bf16.mxu0 0
        %1030 = vmatpush1.bf16.msra.mxu0 0
        %1031 = vmatprep.subr.bf16.mxu0 0
        %1032 = vmatpush1.bf16.msra.mxu0 0
        %1033 = vmatprep.subr.bf16.mxu0 0
        %1034 = vmatpush1.bf16.msra.mxu0 0
        %1035 = vmatprep.subr.bf16.mxu0 0
        %1036 = vmatpush1.bf16.msra.mxu0 0
        %1037 = vmatprep.subr.bf16.mxu0 0
        %1038 = vmatpush1.bf16.msra.mxu0 0
        %1039 = vmatprep.subr.bf16.mxu0 0
        %1040 = vmatpush1.bf16.msra.mxu0 0
        %1041 = vmatprep.subr.bf16.mxu0 0
        %1042 = vmatpush1.bf16.msra.mxu0 0
        %1043 = vmatprep.subr.bf16.mxu0 0
        %1044 = vmatpush1.bf16.msra.mxu0 0
        %1045 = vmatprep.subr.bf16.mxu0 0
        %1046 = vmatpush1.bf16.msra.mxu0 0
        %1047 = vmatprep.subr.bf16.mxu0 0
        %1048 = vmatpush1.bf16.msra.mxu0 0
        %1049 = vmatprep.mubr.bf16.mxu0 0
        %1050 = vmatmul.mubr.bf16.gmra.mrb[0].mxu0 %v953
        %v1051 = vpop.f32.mrb[0].mxu0
        %v1052 = vadd.f32 %v939, %v1051
        %v1053 = vpop.f32.mrb[0].mxu0
        %v1054 = vadd.f32 %v939, %v1053
        %v1055 = vpop.f32.mrb[0].mxu0
        %v1056 = vadd.f32 %v944, %v1055
        %v1057 = vpop.f32.mrb[0].mxu0
        %v1058 = vadd.f32 %v944, %v1057
        %1059 = vdwg.mxu0
        %1060 = vmatprep.subr.bf16.mxu0 %v860
        %1061 = vmatpush1.bf16.msra.mxu0 %v859
        %1062 = vmatprep.subr.bf16.mxu0 %v968
        %1063 = vmatpush1.bf16.msra.mxu0 %v966
        %1064 = vmatprep.subr.bf16.mxu0 0
        %1065 = vmatpush1.bf16.msra.mxu0 0
        %1066 = vmatprep.subr.bf16.mxu0 0
        %1067 = vmatpush1.bf16.msra.mxu0 0
        %1068 = vmatprep.subr.bf16.mxu0 0
        %1069 = vmatpush1.bf16.msra.mxu0 0
        %1070 = vmatprep.subr.bf16.mxu0 0
        %1071 = vmatpush1.bf16.msra.mxu0 0
        %1072 = vmatprep.subr.bf16.mxu0 0
        %1073 = vmatpush1.bf16.msra.mxu0 0
        %1074 = vmatprep.subr.bf16.mxu0 0
        %1075 = vmatpush1.bf16.msra.mxu0 0
        %1076 = vmatprep.subr.bf16.mxu0 0
        %1077 = vmatpush1.bf16.msra.mxu0 0
        %1078 = vmatprep.subr.bf16.mxu0 0
        %1079 = vmatpush1.bf16.msra.mxu0 0
        %1080 = vmatprep.subr.bf16.mxu0 0
        %1081 = vmatpush1.bf16.msra.mxu0 0
        %1082 = vmatprep.subr.bf16.mxu0 0
        %1083 = vmatpush1.bf16.msra.mxu0 0
        %1084 = vmatprep.subr.bf16.mxu0 0
        %1085 = vmatpush1.bf16.msra.mxu0 0
        %1086 = vmatprep.subr.bf16.mxu0 0
        %1087 = vmatpush1.bf16.msra.mxu0 0
        %1088 = vmatprep.subr.bf16.mxu0 0
        %1089 = vmatpush1.bf16.msra.mxu0 0
        %1090 = vmatprep.subr.bf16.mxu0 0
        %1091 = vmatpush1.bf16.msra.mxu0 0
        %1092 = vmatprep.mubr.bf16.mxu0 0
        %1093 = vmatmul.mubr.bf16.gmra.mrb[0].mxu0 %v953
        %v1094 = vpop.f32.mrb[0].mxu0
        %v1095 = vadd.f32 %v939, %v1094
        %v1096 = vpop.f32.mrb[0].mxu0
        %v1097 = vadd.f32 %v939, %v1096
        %v1098 = vpop.f32.mrb[0].mxu0
        %v1099 = vadd.f32 %v944, %v1098
        %v1100 = vpop.f32.mrb[0].mxu0
        %v1101 = vadd.f32 %v944, %v1100
        %1102 = vdwg.mxu0
        %1103 = vmatprep.subr.bf16.mxu0 %v862
        %1104 = vmatpush1.bf16.msra.mxu0 %v861
        %1105 = vmatprep.subr.bf16.mxu0 %v972
        %1106 = vmatpush1.bf16.msra.mxu0 %v970
        %1107 = vmatprep.subr.bf16.mxu0 0
        %1108 = vmatpush1.bf16.msra.mxu0 0
        %1109 = vmatprep.subr.bf16.mxu0 0
        %1110 = vmatpush1.bf16.msra.mxu0 0
        %1111 = vmatprep.subr.bf16.mxu0 0
        %1112 = vmatpush1.bf16.msra.mxu0 0
        %1113 = vmatprep.subr.bf16.mxu0 0
        %1114 = vmatpush1.bf16.msra.mxu0 0
        %1115 = vmatprep.subr.bf16.mxu0 0
        %1116 = vmatpush1.bf16.msra.mxu0 0
        %1117 = vmatprep.subr.bf16.mxu0 0
        %1118 = vmatpush1.bf16.msra.mxu0 0
        %1119 = vmatprep.subr.bf16.mxu0 0
        %1120 = vmatpush1.bf16.msra.mxu0 0
        %1121 = vmatprep.subr.bf16.mxu0 0
        %1122 = vmatpush1.bf16.msra.mxu0 0
        %1123 = vmatprep.subr.bf16.mxu0 0
        %1124 = vmatpush1.bf16.msra.mxu0 0
        %1125 = vmatprep.subr.bf16.mxu0 0
        %1126 = vmatpush1.bf16.msra.mxu0 0
        %1127 = vmatprep.subr.bf16.mxu0 0
        %1128 = vmatpush1.bf16.msra.mxu0 0
        %1129 = vmatprep.subr.bf16.mxu0 0
        %1130 = vmatpush1.bf16.msra.mxu0 0
        %1131 = vmatprep.subr.bf16.mxu0 0
        %1132 = vmatpush1.bf16.msra.mxu0 0
        %1133 = vmatprep.subr.bf16.mxu0 0
        %1134 = vmatpush1.bf16.msra.mxu0 0
        %1135 = vmatprep.mubr.bf16.mxu0 0
        %1136 = vmatmul.mubr.bf16.gmra.mrb[0].mxu0 %v953
        %v1137 = vpop.f32.mrb[0].mxu0
        %v1138 = vadd.f32 %v939, %v1137
        %v1139 = vpop.f32.mrb[0].mxu0
        %v1140 = vpop.f32.mrb[0].mxu0
        %v1141 = vadd.f32 %v944, %v1140
        %v1142 = vpop.f32.mrb[0].mxu0
        %1143 = vdwg.mxu0
        %vm1144 = vcmp.ge.f32.partialorder %v1009, 0.0
        %vm1145 = vcmp.ge.f32.partialorder %v1011, 0.0
        %vm1146 = vcmp.ge.f32.partialorder %v1052, 0.0
        %vm1147 = vcmp.ge.f32.partialorder %v1054, 0.0
        %vm1148 = vcmp.ge.f32.partialorder %v1095, 0.0
        %vm1149 = vcmp.ge.f32.partialorder %v1097, 0.0
        %vm1150 = vcmp.ge.f32.partialorder %v1138, 0.0
        %vm1151 = vcmp.ge.f32.partialorder %v1013, 0.0
        %vm1152 = vcmp.ge.f32.partialorder %v1015, 0.0
        %vm1153 = vcmp.ge.f32.partialorder %v1056, 0.0
        %vm1154 = vcmp.ge.f32.partialorder %v1058, 0.0
        %vm1155 = vcmp.ge.f32.partialorder %v1099, 0.0
        %vm1156 = vcmp.ge.f32.partialorder %v1101, 0.0
        %vm1157 = vcmp.ge.f32.partialorder %v1141, 0.0
        %v1158 = vmul.f32 %v1009, 0.01
        %v1159 = vmul.f32 %v1011, 0.01
        %v1160 = vmul.f32 %v1052, 0.01
        %v1161 = vmul.f32 %v1054, 0.01
        %v1162 = vmul.f32 %v1095, 0.01
        %v1163 = vmul.f32 %v1097, 0.01
        %v1164 = vmul.f32 %v1138, 0.01
        %v1165 = vmul.f32 %v1013, 0.01
        %v1166 = vmul.f32 %v1015, 0.01
        %v1167 = vmul.f32 %v1056, 0.01
        %v1168 = vmul.f32 %v1058, 0.01
        %v1169 = vmul.f32 %v1099, 0.01
        %v1170 = vmul.f32 %v1101, 0.01
        %v1171 = vmul.f32 %v1141, 0.01
        %v1172 = vsel %vm1144, %v1009, %v1158
        %v1173 = vsel %vm1145, %v1011, %v1159
        %v1174 = vsel %vm1146, %v1052, %v1160
        %v1175 = vsel %vm1147, %v1054, %v1161
        %v1176 = vsel %vm1148, %v1095, %v1162
        %v1177 = vsel %vm1149, %v1097, %v1163
        %v1178 = vsel %vm1150, %v1138, %v1164
        %v1179 = vsel %vm1151, %v1013, %v1165
        %v1180 = vsel %vm1152, %v1015, %v1166
        %v1181 = vsel %vm1153, %v1056, %v1167
        %v1182 = vsel %vm1154, %v1058, %v1168
        %v1183 = vsel %vm1155, %v1099, %v1169
        %v1184 = vsel %vm1156, %v1101, %v1170
        %v1185 = vsel %vm1157, %v1141, %v1171
        %v1187 = vlaneseq
        %v1188 = vshrl.u32 %v1187, 7
        %v1189 = vsub.s32 0, %v1188
        %v1190 = vrot.slane %v306, %v1189
        %v1191 = vlaneseq
        %v1192 = vshrl.u32 %v1191, 7
        %v1193 = vsub.s32 1, %v1192
        %v1194 = vrot.slane %v306, %v1193
        %v1195 = vlaneseq
        %v1196 = vshrl.u32 %v1195, 7
        %v1197 = vsub.s32 2, %v1196
        %v1198 = vrot.slane %v306, %v1197
        %v1199 = vlaneseq
        %v1200 = vshrl.u32 %v1199, 7
        %v1201 = vsub.s32 3, %v1200
        %v1202 = vrot.slane %v306, %v1201
        %v1203 = vlaneseq
        %v1204 = vshrl.u32 %v1203, 7
        %v1205 = vsub.s32 4, %v1204
        %v1206 = vrot.slane %v306, %v1205
        %v1207 = vlaneseq
        %v1208 = vshrl.u32 %v1207, 7
        %v1209 = vsub.s32 5, %v1208
        %v1210 = vrot.slane %v306, %v1209
        %v1211 = vlaneseq
        %v1212 = vshrl.u32 %v1211, 7
        %v1213 = vsub.s32 6, %v1212
        %v1214 = vrot.slane %v306, %v1213
        %v1222 = vmul.f32 %v1172, %v1190
        %v1223 = vmul.f32 %v1173, %v1194
        %v1224 = vmul.f32 %v1174, %v1198
        %v1225 = vmul.f32 %v1175, %v1202
        %v1226 = vmul.f32 %v1176, %v1206
        %v1227 = vmul.f32 %v1177, %v1210
        %v1228 = vmul.f32 %v1178, %v1214
        %v1229 = vmul.f32 %v1179, %v1190
        %v1230 = vmul.f32 %v1180, %v1194
        %v1231 = vmul.f32 %v1181, %v1198
        %v1232 = vmul.f32 %v1182, %v1202
        %v1233 = vmul.f32 %v1183, %v1206
        %v1234 = vmul.f32 %v1184, %v1210
        %v1235 = vmul.f32 %v1185, %v1214
        %v1236 = vpack.c.bf16 %v1229, %v1222
        %v1237 = vpack.c.bf16 %v1230, %v1223
        %v1238 = vpack.c.bf16 %v1231, %v1224
        %v1239 = vpack.c.bf16 %v1232, %v1225
        %v1240 = vpack.c.bf16 %v1233, %v1226
        %v1241 = vpack.c.bf16 %v1234, %v1227
        %v1242 = vpack.c.bf16 %v1235, %v1228
        %1250 = vrot.lane.b32.xlu0 %v1236, 31
        %v1251 = vpop.permute.xlu0 %1250
        %1252 = vrot.lane.b32.xlu0 %v1237, 31
        %v1253 = vpop.permute.xlu0 %1252
        %1254 = vrot.lane.b32.xlu0 %v1238, 31
        %v1255 = vpop.permute.xlu0 %1254
        %1256 = vrot.lane.b32.xlu0 %v1239, 31
        %v1257 = vpop.permute.xlu0 %1256
        %1258 = vrot.lane.b32.xlu0 %v1240, 31
        %v1259 = vpop.permute.xlu0 %1258
        %1260 = vrot.lane.b32.xlu0 %v1241, 31
        %v1261 = vpop.permute.xlu0 %1260
        %1262 = vrot.lane.b32.xlu0 %v1242, 31
        %v1263 = vpop.permute.xlu0 %1262
        %vm1264 = vcmask 252928
        %v1265 = vsel %vm1264, %v1251, %v1253
        %v1266 = vsel %vm1264, %v1253, %v1255
        %v1267 = vsel %vm1264, %v1255, %v1257
        %v1268 = vsel %vm1264, %v1257, %v1259
        %v1269 = vsel %vm1264, %v1259, %v1261
        %v1270 = vsel %vm1264, %v1261, %v1263
        %vm1271 = vcmask 252928
        %v1274 = vsel %vm1271, 0, %v1251
        %vm1275 = vcmask 842752
        %v1277 = vsel %vm1275, %v1270, 0
        %v1281 = vrot.slane %v1274, 3
        %v1282 = vrot.slane %v1265, 3
        %v1283 = vrot.slane %v1266, 3
        %v1284 = vrot.slane %v1267, 3
        %v1285 = vrot.slane %v1268, 3
        %v1286 = vrot.slane %v1269, 3
        %v1287 = vrot.slane %v1277, 3
        %v1288 = vrot.slane 0, 3
        %1289 = vrot.lane.b32.xlu0 %v1281, 127
        %v1290 = vpop.permute.xlu0 %1289
        %1291 = vrot.lane.b32.xlu0 %v1282, 127
        %v1292 = vpop.permute.xlu0 %1291
        %1293 = vrot.lane.b32.xlu0 %v1283, 127
        %v1294 = vpop.permute.xlu0 %1293
        %1295 = vrot.lane.b32.xlu0 %v1284, 127
        %v1296 = vpop.permute.xlu0 %1295
        %1297 = vrot.lane.b32.xlu0 %v1285, 127
        %v1298 = vpop.permute.xlu0 %1297
        %1299 = vrot.lane.b32.xlu0 %v1286, 127
        %v1300 = vpop.permute.xlu0 %1299
        %1301 = vrot.lane.b32.xlu0 %v1287, 127
        %v1302 = vpop.permute.xlu0 %1301
        %1303 = vrot.lane.b32.xlu0 %v1288, 127
        %v1304 = vpop.permute.xlu0 %1303
        %v1305 = vsel %vm431, %v1290, %v1292
        %v1306 = vsel %vm431, %v1292, %v1294
        %v1307 = vsel %vm431, %v1294, %v1296
        %v1308 = vsel %vm431, %v1296, %v1298
        %v1309 = vsel %vm431, %v1298, %v1300
        %v1310 = vsel %vm431, %v1300, %v1302
        %v1311 = vsel %vm431, %v1302, %v1304
        %v1312 = vrot.slane %v1274, 6
        %v1313 = vrot.slane %v1265, 6
        %v1314 = vrot.slane %v1266, 6
        %v1315 = vrot.slane %v1267, 6
        %v1316 = vrot.slane %v1268, 6
        %v1317 = vrot.slane %v1269, 6
        %v1318 = vrot.slane %v1277, 6
        %v1319 = vrot.slane 0, 6
        %1320 = vrot.lane.b32.xlu0 %v1312, 126
        %v1321 = vpop.permute.xlu0 %1320
        %1322 = vrot.lane.b32.xlu0 %v1313, 126
        %v1323 = vpop.permute.xlu0 %1322
        %1324 = vrot.lane.b32.xlu0 %v1314, 126
        %v1325 = vpop.permute.xlu0 %1324
        %1326 = vrot.lane.b32.xlu0 %v1315, 126
        %v1327 = vpop.permute.xlu0 %1326
        %1328 = vrot.lane.b32.xlu0 %v1316, 126
        %v1329 = vpop.permute.xlu0 %1328
        %1330 = vrot.lane.b32.xlu0 %v1317, 126
        %v1331 = vpop.permute.xlu0 %1330
        %1332 = vrot.lane.b32.xlu0 %v1318, 126
        %v1333 = vpop.permute.xlu0 %1332
        %1334 = vrot.lane.b32.xlu0 %v1319, 126
        %v1335 = vpop.permute.xlu0 %1334
        %v1336 = vsel %vm471, %v1321, %v1323
        %v1337 = vsel %vm471, %v1323, %v1325
        %v1338 = vsel %vm471, %v1325, %v1327
        %v1339 = vsel %vm471, %v1327, %v1329
        %v1340 = vsel %vm471, %v1329, %v1331
        %v1341 = vsel %vm471, %v1331, %v1333
        %v1342 = vsel %vm471, %v1333, %v1335
        %v1343 = vrot.slane %v1274, 1
        %v1344 = vrot.slane %v1265, 1
        %v1345 = vrot.slane %v1266, 1
        %v1346 = vrot.slane %v1267, 1
        %v1347 = vrot.slane %v1268, 1
        %v1348 = vrot.slane %v1269, 1
        %v1349 = vrot.slane %v1277, 1
        %v1350 = vrot.slane 0, 1
        %1351 = vrot.lane.b32.xlu0 %v1343, 98
        %v1352 = vpop.permute.xlu0 %1351
        %1353 = vrot.lane.b32.xlu0 %v1344, 98
        %v1354 = vpop.permute.xlu0 %1353
        %1355 = vrot.lane.b32.xlu0 %v1345, 98
        %v1356 = vpop.permute.xlu0 %1355
        %1357 = vrot.lane.b32.xlu0 %v1346, 98
        %v1358 = vpop.permute.xlu0 %1357
        %1359 = vrot.lane.b32.xlu0 %v1347, 98
        %v1360 = vpop.permute.xlu0 %1359
        %1361 = vrot.lane.b32.xlu0 %v1348, 98
        %v1362 = vpop.permute.xlu0 %1361
        %1363 = vrot.lane.b32.xlu0 %v1349, 98
        %v1364 = vpop.permute.xlu0 %1363
        %1365 = vrot.lane.b32.xlu0 %v1350, 98
        %v1366 = vpop.permute.xlu0 %1365
        %v1367 = vsel %vm519, %v1352, %v1354
        %v1368 = vsel %vm519, %v1354, %v1356
        %v1369 = vsel %vm519, %v1356, %v1358
        %v1370 = vsel %vm519, %v1358, %v1360
        %v1371 = vsel %vm519, %v1360, %v1362
        %v1372 = vsel %vm519, %v1362, %v1364
        %v1373 = vsel %vm519, %v1364, %v1366
        %v1374 = vrot.slane %v1274, 4
        %v1375 = vrot.slane %v1265, 4
        %v1376 = vrot.slane %v1266, 4
        %v1377 = vrot.slane %v1267, 4
        %v1378 = vrot.slane %v1268, 4
        %v1379 = vrot.slane %v1269, 4
        %v1380 = vrot.slane %v1277, 4
        %v1381 = vrot.slane 0, 4
        %1382 = vrot.lane.b32.xlu0 %v1374, 97
        %v1383 = vpop.permute.xlu0 %1382
        %1384 = vrot.lane.b32.xlu0 %v1375, 97
        %v1385 = vpop.permute.xlu0 %1384
        %1386 = vrot.lane.b32.xlu0 %v1376, 97
        %v1387 = vpop.permute.xlu0 %1386
        %1388 = vrot.lane.b32.xlu0 %v1377, 97
        %v1389 = vpop.permute.xlu0 %1388
        %1390 = vrot.lane.b32.xlu0 %v1378, 97
        %v1391 = vpop.permute.xlu0 %1390
        %1392 = vrot.lane.b32.xlu0 %v1379, 97
        %v1393 = vpop.permute.xlu0 %1392
        %1394 = vrot.lane.b32.xlu0 %v1380, 97
        %v1395 = vpop.permute.xlu0 %1394
        %1396 = vrot.lane.b32.xlu0 %v1381, 97
        %v1397 = vpop.permute.xlu0 %1396
        %v1398 = vsel %vm571, %v1383, %v1385
        %v1399 = vsel %vm571, %v1385, %v1387
        %v1400 = vsel %vm571, %v1387, %v1389
        %v1401 = vsel %vm571, %v1389, %v1391
        %v1402 = vsel %vm571, %v1391, %v1393
        %v1403 = vsel %vm571, %v1393, %v1395
        %v1404 = vsel %vm571, %v1395, %v1397
        %v1405 = vrot.slane %v1274, 7
        %v1406 = vrot.slane %v1265, 7
        %v1407 = vrot.slane %v1266, 7
        %v1408 = vrot.slane %v1267, 7
        %v1409 = vrot.slane %v1268, 7
        %v1410 = vrot.slane %v1269, 7
        %v1411 = vrot.slane %v1277, 7
        %v1412 = vrot.slane 0, 7
        %1413 = vrot.lane.b32.xlu0 %v1405, 96
        %v1414 = vpop.permute.xlu0 %1413
        %1415 = vrot.lane.b32.xlu0 %v1406, 96
        %v1416 = vpop.permute.xlu0 %1415
        %1417 = vrot.lane.b32.xlu0 %v1407, 96
        %v1418 = vpop.permute.xlu0 %1417
        %1419 = vrot.lane.b32.xlu0 %v1408, 96
        %v1420 = vpop.permute.xlu0 %1419
        %1421 = vrot.lane.b32.xlu0 %v1409, 96
        %v1422 = vpop.permute.xlu0 %1421
        %1423 = vrot.lane.b32.xlu0 %v1410, 96
        %v1424 = vpop.permute.xlu0 %1423
        %1425 = vrot.lane.b32.xlu0 %v1411, 96
        %v1426 = vpop.permute.xlu0 %1425
        %1427 = vrot.lane.b32.xlu0 %v1412, 96
        %v1428 = vpop.permute.xlu0 %1427
        %v1429 = vsel %vm627, %v1414, %v1416
        %v1430 = vsel %vm627, %v1416, %v1418
        %v1431 = vsel %vm627, %v1418, %v1420
        %v1432 = vsel %vm627, %v1420, %v1422
        %v1433 = vsel %vm627, %v1422, %v1424
        %v1434 = vsel %vm627, %v1424, %v1426
        %v1435 = vsel %vm627, %v1426, %v1428
        %v1436 = vrot.slane %v1274, 2
        %v1437 = vrot.slane %v1265, 2
        %v1438 = vrot.slane %v1266, 2
        %v1439 = vrot.slane %v1267, 2
        %v1440 = vrot.slane %v1268, 2
        %v1441 = vrot.slane %v1269, 2
        %v1442 = vrot.slane %v1277, 2
        %v1443 = vrot.slane 0, 2
        %1444 = vrot.lane.b32.xlu0 %v1436, 68
        %v1445 = vpop.permute.xlu0 %1444
        %1446 = vrot.lane.b32.xlu0 %v1437, 68
        %v1447 = vpop.permute.xlu0 %1446
        %1448 = vrot.lane.b32.xlu0 %v1438, 68
        %v1449 = vpop.permute.xlu0 %1448
        %1450 = vrot.lane.b32.xlu0 %v1439, 68
        %v1451 = vpop.permute.xlu0 %1450
        %1452 = vrot.lane.b32.xlu0 %v1440, 68
        %v1453 = vpop.permute.xlu0 %1452
        %1454 = vrot.lane.b32.xlu0 %v1441, 68
        %v1455 = vpop.permute.xlu0 %1454
        %1456 = vrot.lane.b32.xlu0 %v1442, 68
        %v1457 = vpop.permute.xlu0 %1456
        %1458 = vrot.lane.b32.xlu0 %v1443, 68
        %v1459 = vpop.permute.xlu0 %1458
        %v1460 = vsel %vm674, %v1445, %v1447
        %v1461 = vsel %vm674, %v1447, %v1449
        %v1462 = vsel %vm674, %v1449, %v1451
        %v1463 = vsel %vm674, %v1451, %v1453
        %v1464 = vsel %vm674, %v1453, %v1455
        %v1465 = vsel %vm674, %v1455, %v1457
        %v1466 = vsel %vm674, %v1457, %v1459
        %v1467 = vrot.slane %v1274, 5
        %v1468 = vrot.slane %v1265, 5
        %v1469 = vrot.slane %v1266, 5
        %v1470 = vrot.slane %v1267, 5
        %v1471 = vrot.slane %v1268, 5
        %v1472 = vrot.slane %v1269, 5
        %v1473 = vrot.slane %v1277, 5
        %v1474 = vrot.slane 0, 5
        %1475 = vrot.lane.b32.xlu0 %v1467, 67
        %v1476 = vpop.permute.xlu0 %1475
        %1477 = vrot.lane.b32.xlu0 %v1468, 67
        %v1478 = vpop.permute.xlu0 %1477
        %1479 = vrot.lane.b32.xlu0 %v1469, 67
        %v1480 = vpop.permute.xlu0 %1479
        %1481 = vrot.lane.b32.xlu0 %v1470, 67
        %v1482 = vpop.permute.xlu0 %1481
        %1483 = vrot.lane.b32.xlu0 %v1471, 67
        %v1484 = vpop.permute.xlu0 %1483
        %1485 = vrot.lane.b32.xlu0 %v1472, 67
        %v1486 = vpop.permute.xlu0 %1485
        %1487 = vrot.lane.b32.xlu0 %v1473, 67
        %v1488 = vpop.permute.xlu0 %1487
        %1489 = vrot.lane.b32.xlu0 %v1474, 67
        %v1490 = vpop.permute.xlu0 %1489
        %v1491 = vsel %vm722, %v1476, %v1478
        %v1492 = vsel %vm722, %v1478, %v1480
        %v1493 = vsel %vm722, %v1480, %v1482
        %v1494 = vsel %vm722, %v1482, %v1484
        %v1495 = vsel %vm722, %v1484, %v1486
        %v1496 = vsel %vm722, %v1486, %v1488
        %v1497 = vsel %vm722, %v1488, %v1490
        %1498 = vrot.lane.b32.xlu0 %v1274, 66
        %v1499 = vpop.permute.xlu0 %1498
        %1500 = vrot.lane.b32.xlu0 %v1265, 66
        %v1501 = vpop.permute.xlu0 %1500
        %1502 = vrot.lane.b32.xlu0 %v1266, 66
        %v1503 = vpop.permute.xlu0 %1502
        %1504 = vrot.lane.b32.xlu0 %v1267, 66
        %v1505 = vpop.permute.xlu0 %1504
        %1506 = vrot.lane.b32.xlu0 %v1268, 66
        %v1507 = vpop.permute.xlu0 %1506
        %1508 = vrot.lane.b32.xlu0 %v1269, 66
        %v1509 = vpop.permute.xlu0 %1508
        %1510 = vrot.lane.b32.xlu0 %v1277, 66
        %v1511 = vpop.permute.xlu0 %1510
        %1512 = vrot.lane.b32.xlu0 0, 66
        %v1513 = vpop.permute.xlu0 %1512
        %v1514 = vsel %vm756, %v1499, %v1501
        %v1515 = vsel %vm756, %v1501, %v1503
        %v1516 = vsel %vm756, %v1503, %v1505
        %v1517 = vsel %vm756, %v1505, %v1507
        %v1518 = vsel %vm756, %v1507, %v1509
        %v1519 = vsel %vm756, %v1509, %v1511
        %v1520 = vsel %vm756, %v1511, %v1513
        %v1522 = vsel %vm955, %v1274, %v1305
        %v1526 = vsel %vm955, %v1265, %v1306
        %v1530 = vsel %vm955, %v1266, %v1307
        %v1534 = vsel %vm955, %v1267, %v1308
        %v1538 = vsel %vm955, %v1268, %v1309
        %v1542 = vsel %vm955, %v1269, %v1310
        %v1545 = vsel %vm955, %v1277, %v1311
        %v1548 = vsel %vm955, 0, %v1304
        %vm1550 = vcmask 1041408
        %v1552 = vsel %vm1550, %v1305, %v1336
        %v1554 = vsel %vm1550, %v1306, %v1337
        %v1556 = vsel %vm1550, %v1307, %v1338
        %v1558 = vsel %vm1550, %v1308, %v1339
        %v1560 = vsel %vm1550, %v1309, %v1340
        %v1562 = vsel %vm1550, %v1310, %v1341
        %v1564 = vsel %vm1550, %v1311, %v1342
        %v1566 = vsel %vm1550, %v1304, %v1335
        %vm1567 = vcmask 1046528
        %v1569 = vsel %vm1567, %v1552, %v1367
        %v1572 = vsel %vm1567, %v1554, %v1368
        %v1575 = vsel %vm1567, %v1556, %v1369
        %v1578 = vsel %vm1567, %v1558, %v1370
        %v1581 = vsel %vm1567, %v1560, %v1371
        %v1584 = vsel %vm1567, %v1562, %v1372
        %v1587 = vsel %vm1567, %v1564, %v1373
        %v1590 = vsel %vm1567, %v1566, %v1366
        %v1593 = vsel %vm907, %v1367, %v1398
        %v1596 = vsel %vm907, %v1368, %v1399
        %v1599 = vsel %vm907, %v1369, %v1400
        %v1602 = vsel %vm907, %v1370, %v1401
        %v1605 = vsel %vm907, %v1371, %v1402
        %v1608 = vsel %vm907, %v1372, %v1403
        %v1611 = vsel %vm907, %v1373, %v1404
        %v1614 = vsel %vm907, %v1366, %v1397
        %v1617 = vsel %vm863, %v1398, %v1429
        %v1619 = vsel %vm863, %v1399, %v1430
        %v1621 = vsel %vm863, %v1400, %v1431
        %v1623 = vsel %vm863, %v1401, %v1432
        %v1625 = vsel %vm863, %v1402, %v1433
        %v1627 = vsel %vm863, %v1403, %v1434
        %v1629 = vsel %vm863, %v1404, %v1435
        %v1631 = vsel %vm863, %v1397, %v1428
        %v1633 = vsel %vm819, %v1617, %v1460
        %v1636 = vsel %vm819, %v1619, %v1461
        %v1639 = vsel %vm819, %v1621, %v1462
        %v1642 = vsel %vm819, %v1623, %v1463
        %v1645 = vsel %vm819, %v1625, %v1464
        %v1648 = vsel %vm819, %v1627, %v1465
        %v1651 = vsel %vm819, %v1629, %v1466
        %v1654 = vsel %vm819, %v1631, %v1459
        %v1657 = vsel %vm775, %v1460, %v1491
        %v1660 = vsel %vm775, %v1461, %v1492
        %v1663 = vsel %vm775, %v1462, %v1493
        %v1666 = vsel %vm775, %v1463, %v1494
        %v1669 = vsel %vm775, %v1464, %v1495
        %v1672 = vsel %vm775, %v1465, %v1496
        %v1675 = vsel %vm775, %v1466, %v1497
        %v1678 = vsel %vm775, %v1459, %v1490
        %v1680 = vld [vmem:[%s3] sm:$0xf]
        %v1681 = vld [vmem:[%s3 + $0x4] sm:$0xf]
        %v1682 = vld [vmem:[%s4] sm:$0xff]
        %v1683 = vld [vmem:[%s4 + $0x8] sm:$0x7f]
        %1685 = vset.pattern.permute.xlu0 0
        %1686 = vperm.xlu0 %1685, %v1682
        %v1687 = vpop.permute.xlu0 %1686
        %1690 = vset.pattern.permute.xlu0 0
        %1691 = vperm.xlu0 %1690, %v1683
        %v1692 = vpop.permute.xlu0 %1691
        %v1696 = vunpack.c.l.b16 %v1680
        %v1697 = vunpack.c.l.b16 %v1681
        %v1698 = vpack.c.b16 %v1697, %v1696
        %vm1699 = vcmask 736256
        %v1701 = vsel %vm1699, %v1698, 0
        %v1704 = vsel %vm955, %v1514, 0
        %v1707 = vsel %vm955, %v1515, 0
        %v1710 = vsel %vm955, %v1516, 0
        %v1713 = vsel %vm955, %v1517, 0
        %v1716 = vsel %vm955, %v1518, 0
        %v1719 = vsel %vm955, %v1519, 0
        %v1722 = vsel %vm955, %v1520, 0
        %v1725 = vsel %vm955, %v1513, 0
        %1727 = vmatprep.subr.bf16.mxu0 %v1526
        %1728 = vmatpush1.bf16.msra.mxu0 %v1522
        %1729 = vmatprep.subr.bf16.mxu0 %v1572
        %1730 = vmatpush1.bf16.msra.mxu0 %v1569
        %1731 = vmatprep.subr.bf16.mxu0 %v1596
        %1732 = vmatpush1.bf16.msra.mxu0 %v1593
        %1733 = vmatprep.subr.bf16.mxu0 %v1636
        %1734 = vmatpush1.bf16.msra.mxu0 %v1633
        %1735 = vmatprep.subr.bf16.mxu0 %v1660
        %1736 = vmatpush1.bf16.msra.mxu0 %v1657
        %1737 = vmatprep.subr.bf16.mxu0 %v1707
        %1738 = vmatpush1.bf16.msra.mxu0 %v1704
        %1739 = vmatprep.subr.bf16.mxu0 0
        %1740 = vmatpush1.bf16.msra.mxu0 0
        %1741 = vmatprep.subr.bf16.mxu0 0
        %1742 = vmatpush1.bf16.msra.mxu0 0
        %1743 = vmatprep.subr.bf16.mxu0 0
        %1744 = vmatpush1.bf16.msra.mxu0 0
        %1745 = vmatprep.subr.bf16.mxu0 0
        %1746 = vmatpush1.bf16.msra.mxu0 0
        %1747 = vmatprep.subr.bf16.mxu0 0
        %1748 = vmatpush1.bf16.msra.mxu0 0
        %1749 = vmatprep.subr.bf16.mxu0 0
        %1750 = vmatpush1.bf16.msra.mxu0 0
        %1751 = vmatprep.subr.bf16.mxu0 0
        %1752 = vmatpush1.bf16.msra.mxu0 0
        %1753 = vmatprep.subr.bf16.mxu0 0
        %1754 = vmatpush1.bf16.msra.mxu0 0
        %1755 = vmatprep.subr.bf16.mxu0 0
        %1756 = vmatpush1.bf16.msra.mxu0 0
        %1757 = vmatprep.subr.bf16.mxu0 0
        %1758 = vmatpush1.bf16.msra.mxu0 0
        %1759 = vmatprep.mubr.bf16.mxu0 0
        %1760 = vmatmul.mubr.bf16.gmra.mrb[0].mxu0 %v1701
        %v1761 = vpop.f32.mrb[0].mxu0
        %v1762 = vadd.f32 %v1687, %v1761
        %v1763 = vpop.f32.mrb[0].mxu0
        %v1764 = vadd.f32 %v1687, %v1763
        %v1765 = vpop.f32.mrb[0].mxu0
        %v1766 = vadd.f32 %v1692, %v1765
        %v1767 = vpop.f32.mrb[0].mxu0
        %v1768 = vadd.f32 %v1692, %v1767
        %1769 = vdwg.mxu0
        %1770 = vmatprep.subr.bf16.mxu0 %v1534
        %1771 = vmatpush1.bf16.msra.mxu0 %v1530
        %1772 = vmatprep.subr.bf16.mxu0 %v1578
        %1773 = vmatpush1.bf16.msra.mxu0 %v1575
        %1774 = vmatprep.subr.bf16.mxu0 %v1602
        %1775 = vmatpush1.bf16.msra.mxu0 %v1599
        %1776 = vmatprep.subr.bf16.mxu0 %v1642
        %1777 = vmatpush1.bf16.msra.mxu0 %v1639
        %1778 = vmatprep.subr.bf16.mxu0 %v1666
        %1779 = vmatpush1.bf16.msra.mxu0 %v1663
        %1780 = vmatprep.subr.bf16.mxu0 %v1713
        %1781 = vmatpush1.bf16.msra.mxu0 %v1710
        %1782 = vmatprep.subr.bf16.mxu0 0
        %1783 = vmatpush1.bf16.msra.mxu0 0
        %1784 = vmatprep.subr.bf16.mxu0 0
        %1785 = vmatpush1.bf16.msra.mxu0 0
        %1786 = vmatprep.subr.bf16.mxu0 0
        %1787 = vmatpush1.bf16.msra.mxu0 0
        %1788 = vmatprep.subr.bf16.mxu0 0
        %1789 = vmatpush1.bf16.msra.mxu0 0
        %1790 = vmatprep.subr.bf16.mxu0 0
        %1791 = vmatpush1.bf16.msra.mxu0 0
        %1792 = vmatprep.subr.bf16.mxu0 0
        %1793 = vmatpush1.bf16.msra.mxu0 0
        %1794 = vmatprep.subr.bf16.mxu0 0
        %1795 = vmatpush1.bf16.msra.mxu0 0
        %1796 = vmatprep.subr.bf16.mxu0 0
        %1797 = vmatpush1.bf16.msra.mxu0 0
        %1798 = vmatprep.subr.bf16.mxu0 0
        %1799 = vmatpush1.bf16.msra.mxu0 0
        %1800 = vmatprep.subr.bf16.mxu0 0
        %1801 = vmatpush1.bf16.msra.mxu0 0
        %1802 = vmatprep.mubr.bf16.mxu0 0
        %1803 = vmatmul.mubr.bf16.gmra.mrb[0].mxu0 %v1701
        %v1804 = vpop.f32.mrb[0].mxu0
        %v1805 = vadd.f32 %v1687, %v1804
        %v1806 = vpop.f32.mrb[0].mxu0
        %v1807 = vadd.f32 %v1687, %v1806
        %v1808 = vpop.f32.mrb[0].mxu0
        %v1809 = vadd.f32 %v1692, %v1808
        %v1810 = vpop.f32.mrb[0].mxu0
        %v1811 = vadd.f32 %v1692, %v1810
        %1812 = vdwg.mxu0
        %1813 = vmatprep.subr.bf16.mxu0 %v1542
        %1814 = vmatpush1.bf16.msra.mxu0 %v1538
        %1815 = vmatprep.subr.bf16.mxu0 %v1584
        %1816 = vmatpush1.bf16.msra.mxu0 %v1581
        %1817 = vmatprep.subr.bf16.mxu0 %v1608
        %1818 = vmatpush1.bf16.msra.mxu0 %v1605
        %1819 = vmatprep.subr.bf16.mxu0 %v1648
        %1820 = vmatpush1.bf16.msra.mxu0 %v1645
        %1821 = vmatprep.subr.bf16.mxu0 %v1672
        %1822 = vmatpush1.bf16.msra.mxu0 %v1669
        %1823 = vmatprep.subr.bf16.mxu0 %v1719
        %1824 = vmatpush1.bf16.msra.mxu0 %v1716
        %1825 = vmatprep.subr.bf16.mxu0 0
        %1826 = vmatpush1.bf16.msra.mxu0 0
        %1827 = vmatprep.subr.bf16.mxu0 0
        %1828 = vmatpush1.bf16.msra.mxu0 0
        %1829 = vmatprep.subr.bf16.mxu0 0
        %1830 = vmatpush1.bf16.msra.mxu0 0
        %1831 = vmatprep.subr.bf16.mxu0 0
        %1832 = vmatpush1.bf16.msra.mxu0 0
        %1833 = vmatprep.subr.bf16.mxu0 0
        %1834 = vmatpush1.bf16.msra.mxu0 0
        %1835 = vmatprep.subr.bf16.mxu0 0
        %1836 = vmatpush1.bf16.msra.mxu0 0
        %1837 = vmatprep.subr.bf16.mxu0 0
        %1838 = vmatpush1.bf16.msra.mxu0 0
        %1839 = vmatprep.subr.bf16.mxu0 0
        %1840 = vmatpush1.bf16.msra.mxu0 0
        %1841 = vmatprep.subr.bf16.mxu0 0
        %1842 = vmatpush1.bf16.msra.mxu0 0
        %1843 = vmatprep.subr.bf16.mxu0 0
        %1844 = vmatpush1.bf16.msra.mxu0 0
        %1845 = vmatprep.mubr.bf16.mxu0 0
        %1846 = vmatmul.mubr.bf16.gmra.mrb[0].mxu0 %v1701
        %v1847 = vpop.f32.mrb[0].mxu0
        %v1848 = vadd.f32 %v1687, %v1847
        %v1849 = vpop.f32.mrb[0].mxu0
        %v1850 = vadd.f32 %v1687, %v1849
        %v1851 = vpop.f32.mrb[0].mxu0
        %v1852 = vadd.f32 %v1692, %v1851
        %v1853 = vpop.f32.mrb[0].mxu0
        %v1854 = vadd.f32 %v1692, %v1853
        %1855 = vdwg.mxu0
        %1856 = vmatprep.subr.bf16.mxu0 %v1548
        %1857 = vmatpush1.bf16.msra.mxu0 %v1545
        %1858 = vmatprep.subr.bf16.mxu0 %v1590
        %1859 = vmatpush1.bf16.msra.mxu0 %v1587
        %1860 = vmatprep.subr.bf16.mxu0 %v1614
        %1861 = vmatpush1.bf16.msra.mxu0 %v1611
        %1862 = vmatprep.subr.bf16.mxu0 %v1654
        %1863 = vmatpush1.bf16.msra.mxu0 %v1651
        %1864 = vmatprep.subr.bf16.mxu0 %v1678
        %1865 = vmatpush1.bf16.msra.mxu0 %v1675
        %1866 = vmatprep.subr.bf16.mxu0 %v1725
        %1867 = vmatpush1.bf16.msra.mxu0 %v1722
        %1868 = vmatprep.subr.bf16.mxu0 0
        %1869 = vmatpush1.bf16.msra.mxu0 0
        %1870 = vmatprep.subr.bf16.mxu0 0
        %1871 = vmatpush1.bf16.msra.mxu0 0
        %1872 = vmatprep.subr.bf16.mxu0 0
        %1873 = vmatpush1.bf16.msra.mxu0 0
        %1874 = vmatprep.subr.bf16.mxu0 0
        %1875 = vmatpush1.bf16.msra.mxu0 0
        %1876 = vmatprep.subr.bf16.mxu0 0
        %1877 = vmatpush1.bf16.msra.mxu0 0
        %1878 = vmatprep.subr.bf16.mxu0 0
        %1879 = vmatpush1.bf16.msra.mxu0 0
        %1880 = vmatprep.subr.bf16.mxu0 0
        %1881 = vmatpush1.bf16.msra.mxu0 0
        %1882 = vmatprep.subr.bf16.mxu0 0
        %1883 = vmatpush1.bf16.msra.mxu0 0
        %1884 = vmatprep.subr.bf16.mxu0 0
        %1885 = vmatpush1.bf16.msra.mxu0 0
        %1886 = vmatprep.subr.bf16.mxu0 0
        %1887 = vmatpush1.bf16.msra.mxu0 0
        %1888 = vmatprep.mubr.bf16.mxu0 0
        %1889 = vmatmul.mubr.bf16.gmra.mrb[0].mxu0 %v1701
        %v1890 = vpop.f32.mrb[0].mxu0
        %v1891 = vadd.f32 %v1687, %v1890
        %v1892 = vpop.f32.mrb[0].mxu0
        %v1893 = vadd.f32 %v1687, %v1892
        %v1894 = vpop.f32.mrb[0].mxu0
        %v1895 = vadd.f32 %v1692, %v1894
        %v1896 = vpop.f32.mrb[0].mxu0
        %v1897 = vadd.f32 %v1692, %v1896
        %1898 = vdwg.mxu0
        %vm1899 = vcmp.ge.f32.partialorder %v1762, 0.0
        %vm1900 = vcmp.ge.f32.partialorder %v1764, 0.0
        %vm1901 = vcmp.ge.f32.partialorder %v1805, 0.0
        %vm1902 = vcmp.ge.f32.partialorder %v1807, 0.0
        %vm1903 = vcmp.ge.f32.partialorder %v1848, 0.0
        %vm1904 = vcmp.ge.f32.partialorder %v1850, 0.0
        %vm1905 = vcmp.ge.f32.partialorder %v1891, 0.0
        %vm1906 = vcmp.ge.f32.partialorder %v1893, 0.0
        %vm1907 = vcmp.ge.f32.partialorder %v1766, 0.0
        %vm1908 = vcmp.ge.f32.partialorder %v1768, 0.0
        %vm1909 = vcmp.ge.f32.partialorder %v1809, 0.0
        %vm1910 = vcmp.ge.f32.partialorder %v1811, 0.0
        %vm1911 = vcmp.ge.f32.partialorder %v1852, 0.0
        %vm1912 = vcmp.ge.f32.partialorder %v1854, 0.0
        %vm1913 = vcmp.ge.f32.partialorder %v1895, 0.0
        %vm1914 = vcmp.ge.f32.partialorder %v1897, 0.0
        %v1915 = vmul.f32 %v1762, 0.01
        %v1916 = vmul.f32 %v1764, 0.01
        %v1917 = vmul.f32 %v1805, 0.01
        %v1918 = vmul.f32 %v1807, 0.01
        %v1919 = vmul.f32 %v1848, 0.01
        %v1920 = vmul.f32 %v1850, 0.01
        %v1921 = vmul.f32 %v1891, 0.01
        %v1922 = vmul.f32 %v1893, 0.01
        %v1923 = vmul.f32 %v1766, 0.01
        %v1924 = vmul.f32 %v1768, 0.01
        %v1925 = vmul.f32 %v1809, 0.01
        %v1926 = vmul.f32 %v1811, 0.01
        %v1927 = vmul.f32 %v1852, 0.01
        %v1928 = vmul.f32 %v1854, 0.01
        %v1929 = vmul.f32 %v1895, 0.01
        %v1930 = vmul.f32 %v1897, 0.01
        %v1931 = vsel %vm1899, %v1762, %v1915
        %v1932 = vsel %vm1900, %v1764, %v1916
        %v1933 = vsel %vm1901, %v1805, %v1917
        %v1934 = vsel %vm1902, %v1807, %v1918
        %v1935 = vsel %vm1903, %v1848, %v1919
        %v1936 = vsel %vm1904, %v1850, %v1920
        %v1937 = vsel %vm1905, %v1891, %v1921
        %v1938 = vsel %vm1906, %v1893, %v1922
        %v1939 = vsel %vm1907, %v1766, %v1923
        %v1940 = vsel %vm1908, %v1768, %v1924
        %v1941 = vsel %vm1909, %v1809, %v1925
        %v1942 = vsel %vm1910, %v1811, %v1926
        %v1943 = vsel %vm1911, %v1852, %v1927
        %v1944 = vsel %vm1912, %v1854, %v1928
        %v1945 = vsel %vm1913, %v1895, %v1929
        %v1946 = vsel %vm1914, %v1897, %v1930
        %v1947 = vpack.c.bf16 %v1939, %v1931
        %v1948 = vpack.c.bf16 %v1940, %v1932
        %v1949 = vpack.c.bf16 %v1941, %v1933
        %v1950 = vpack.c.bf16 %v1942, %v1934
        %v1951 = vpack.c.bf16 %v1943, %v1935
        %v1952 = vpack.c.bf16 %v1944, %v1936
        %v1953 = vpack.c.bf16 %v1945, %v1937
        %v1954 = vpack.c.bf16 %v1946, %v1938
        %v1955 = vld [vmem:[%s5] sm:$0xff]
        %v1956 = vld [vmem:[%s5 + $0x8] sm:$0xff]
        %v1957 = vld [vmem:[%s5 + $0x10] sm:$0xff]
        %v1958 = vld [vmem:[%s5 + $0x18] sm:$0xff]
        %v1959 = vld [vmem:[%s5 + $0x20] sm:$0xff]
        %v1960 = vld [vmem:[%s5 + $0x28] sm:$0xff]
        %v1961 = vld [vmem:[%s5 + $0x30] sm:$0xff]
        %v1962 = vld [vmem:[%s5 + $0x38] sm:$0xff]
        %v1963 = vld [vmem:[%s5 + $0x40] sm:$0xff]
        %v1964 = vld [vmem:[%s5 + $0x48] sm:$0xff]
        %v1965 = vld [vmem:[%s5 + $0x50] sm:$0xff]
        %v1966 = vld [vmem:[%s5 + $0x58] sm:$0xff]
        %v1967 = vld [vmem:[%s5 + $0x60] sm:$0xff]
        %v1968 = vld [vmem:[%s5 + $0x68] sm:$0xff]
        %v1969 = vld [vmem:[%s5 + $0x70] sm:$0xff]
        %v1970 = vld [vmem:[%s5 + $0x78] sm:$0xff]
        %v1971 = vld [vmem:[%s5 + $0x80] sm:$0xff]
        %v1972 = vld [vmem:[%s5 + $0x88] sm:$0xff]
        %v1973 = vld [vmem:[%s5 + $0x90] sm:$0xff]
        %v1974 = vld [vmem:[%s5 + $0x98] sm:$0xff]
        %v1975 = vld [vmem:[%s5 + $0xa0] sm:$0xff]
        %v1976 = vld [vmem:[%s5 + $0xa8] sm:$0xff]
        %v1977 = vld [vmem:[%s5 + $0xb0] sm:$0xff]
        %v1978 = vld [vmem:[%s5 + $0xb8] sm:$0xff]
        %v1979 = vld [vmem:[%s5 + $0xc0] sm:$0xff]
        %v1980 = vld [vmem:[%s5 + $0xc8] sm:$0xff]
        %v1981 = vld [vmem:[%s5 + $0xd0] sm:$0xff]
        %v1982 = vld [vmem:[%s5 + $0xd8] sm:$0xff]
        %v1983 = vld [vmem:[%s5 + $0xe0] sm:$0xff]
        %v1984 = vld [vmem:[%s5 + $0xe8] sm:$0xff]
        %v1985 = vld [vmem:[%s5 + $0xf0] sm:$0xff]
        %v1986 = vld [vmem:[%s5 + $0xf8] sm:$0xff]
        %v1987 = vld [vmem:[%s5 + $0x100] sm:$0xff]
        %v1988 = vld [vmem:[%s5 + $0x108] sm:$0xff]
        %v1989 = vld [vmem:[%s5 + $0x110] sm:$0xff]
        %v1990 = vld [vmem:[%s5 + $0x118] sm:$0xff]
        %v1991 = vld [vmem:[%s5 + $0x120] sm:$0xff]
        %v1992 = vld [vmem:[%s5 + $0x128] sm:$0xff]
        %v1993 = vld [vmem:[%s5 + $0x130] sm:$0xff]
        %v1994 = vld [vmem:[%s5 + $0x138] sm:$0xff]
        %v1995 = vld [vmem:[%s5 + $0x140] sm:$0xff]
        %v1996 = vld [vmem:[%s5 + $0x148] sm:$0xff]
        %v1997 = vld [vmem:[%s5 + $0x150] sm:$0xff]
        %v1998 = vld [vmem:[%s5 + $0x158] sm:$0xff]
        %v1999 = vld [vmem:[%s5 + $0x160] sm:$0xff]
        %v2000 = vld [vmem:[%s5 + $0x168] sm:$0xff]
        %v2001 = vld [vmem:[%s5 + $0x170] sm:$0xff]
        %v2002 = vld [vmem:[%s5 + $0x178] sm:$0xff]
        %v2003 = vld [vmem:[%s5 + $0x180] sm:$0xff]
        %v2004 = vld [vmem:[%s5 + $0x188] sm:$0xff]
        %v2005 = vld [vmem:[%s5 + $0x190] sm:$0xff]
        %v2006 = vld [vmem:[%s5 + $0x198] sm:$0xff]
        %v2007 = vld [vmem:[%s5 + $0x1a0] sm:$0xff]
        %v2008 = vld [vmem:[%s5 + $0x1a8] sm:$0xff]
        %v2009 = vld [vmem:[%s5 + $0x1b0] sm:$0xff]
        %v2010 = vld [vmem:[%s5 + $0x1b8] sm:$0xff]
        %v2011 = vld [vmem:[%s5 + $0x1c0] sm:$0xff]
        %v2012 = vld [vmem:[%s5 + $0x1c8] sm:$0xff]
        %v2013 = vld [vmem:[%s5 + $0x1d0] sm:$0xff]
        %v2014 = vld [vmem:[%s5 + $0x1d8] sm:$0xff]
        %v2015 = vld [vmem:[%s5 + $0x1e0] sm:$0xff]
        %v2016 = vld [vmem:[%s5 + $0x1e8] sm:$0xff]
        %v2017 = vld [vmem:[%s5 + $0x1f0] sm:$0xff]
        %v2018 = vld [vmem:[%s5 + $0x1f8] sm:$0xff]
        %v2019 = vld [vmem:[%s5 + $0x200] sm:$0xff]
        %v2020 = vld [vmem:[%s5 + $0x208] sm:$0xff]
        %v2021 = vld [vmem:[%s5 + $0x210] sm:$0xff]
        %v2022 = vld [vmem:[%s5 + $0x218] sm:$0xff]
        %v2023 = vld [vmem:[%s5 + $0x220] sm:$0xff]
        %v2024 = vld [vmem:[%s5 + $0x228] sm:$0xff]
        %v2025 = vld [vmem:[%s5 + $0x230] sm:$0xff]
        %v2026 = vld [vmem:[%s5 + $0x238] sm:$0xff]
        %v2027 = vld [vmem:[%s5 + $0x240] sm:$0xff]
        %v2028 = vld [vmem:[%s5 + $0x248] sm:$0xff]
        %v2029 = vld [vmem:[%s5 + $0x250] sm:$0xff]
        %v2030 = vld [vmem:[%s5 + $0x258] sm:$0xff]
        %v2031 = vld [vmem:[%s5 + $0x260] sm:$0xff]
        %v2032 = vld [vmem:[%s5 + $0x268] sm:$0xff]
        %v2033 = vld [vmem:[%s5 + $0x270] sm:$0xff]
        %v2034 = vld [vmem:[%s5 + $0x278] sm:$0xff]
        %v2035 = vld [vmem:[%s5 + $0x280] sm:$0xff]
        %v2036 = vld [vmem:[%s5 + $0x288] sm:$0xff]
        %v2037 = vld [vmem:[%s5 + $0x290] sm:$0xff]
        %v2038 = vld [vmem:[%s5 + $0x298] sm:$0xff]
        %v2039 = vld [vmem:[%s5 + $0x2a0] sm:$0xff]
        %v2040 = vld [vmem:[%s5 + $0x2a8] sm:$0xff]
        %v2041 = vld [vmem:[%s5 + $0x2b0] sm:$0xff]
        %v2042 = vld [vmem:[%s5 + $0x2b8] sm:$0xff]
        %v2043 = vld [vmem:[%s5 + $0x2c0] sm:$0xff]
        %v2044 = vld [vmem:[%s5 + $0x2c8] sm:$0xff]
        %v2045 = vld [vmem:[%s5 + $0x2d0] sm:$0xff]
        %v2046 = vld [vmem:[%s5 + $0x2d8] sm:$0xff]
        %v2047 = vld [vmem:[%s5 + $0x2e0] sm:$0xff]
        %v2048 = vld [vmem:[%s5 + $0x2e8] sm:$0xff]
        %v2049 = vld [vmem:[%s5 + $0x2f0] sm:$0xff]
        %v2050 = vld [vmem:[%s5 + $0x2f8] sm:$0xff]
        %v2051 = vld [vmem:[%s5 + $0x300] sm:$0xff]
        %v2052 = vld [vmem:[%s5 + $0x308] sm:$0xff]
        %v2053 = vld [vmem:[%s5 + $0x310] sm:$0xff]
        %v2054 = vld [vmem:[%s5 + $0x318] sm:$0xff]
        %v2055 = vld [vmem:[%s5 + $0x320] sm:$0xff]
        %v2056 = vld [vmem:[%s5 + $0x328] sm:$0xff]
        %v2057 = vld [vmem:[%s5 + $0x330] sm:$0xff]
        %v2058 = vld [vmem:[%s5 + $0x338] sm:$0xff]
        %v2059 = vld [vmem:[%s5 + $0x340] sm:$0xff]
        %v2060 = vld [vmem:[%s5 + $0x348] sm:$0xff]
        %v2061 = vld [vmem:[%s5 + $0x350] sm:$0xff]
        %v2062 = vld [vmem:[%s5 + $0x358] sm:$0xff]
        %v2063 = vld [vmem:[%s5 + $0x360] sm:$0xff]
        %v2064 = vld [vmem:[%s5 + $0x368] sm:$0xff]
        %v2065 = vld [vmem:[%s5 + $0x370] sm:$0xff]
        %v2066 = vld [vmem:[%s5 + $0x378] sm:$0xff]
        %v2067 = vld [vmem:[%s5 + $0x380] sm:$0x33]
        %v2181 = vunpack.c.l.b16 %v1955
        %v2182 = vunpack.c.h.b16 %v1955
        %v2183 = vunpack.c.l.b16 %v1956
        %v2184 = vunpack.c.h.b16 %v1956
        %v2185 = vunpack.c.l.b16 %v1957
        %v2186 = vunpack.c.h.b16 %v1957
        %v2187 = vunpack.c.l.b16 %v1958
        %v2188 = vunpack.c.h.b16 %v1958
        %v2189 = vunpack.c.l.b16 %v1959
        %v2190 = vunpack.c.h.b16 %v1959
        %v2191 = vunpack.c.l.b16 %v1960
        %v2192 = vunpack.c.h.b16 %v1960
        %v2193 = vunpack.c.l.b16 %v1961
        %v2194 = vunpack.c.h.b16 %v1961
        %v2195 = vunpack.c.l.b16 %v1962
        %v2196 = vunpack.c.h.b16 %v1962
        %v2197 = vunpack.c.l.b16 %v1963
        %v2198 = vunpack.c.h.b16 %v1963
        %v2199 = vunpack.c.l.b16 %v1964
        %v2200 = vunpack.c.h.b16 %v1964
        %v2201 = vunpack.c.l.b16 %v1965
        %v2202 = vunpack.c.h.b16 %v1965
        %v2203 = vunpack.c.l.b16 %v1966
        %v2204 = vunpack.c.h.b16 %v1966
        %v2205 = vunpack.c.l.b16 %v1967
        %v2206 = vunpack.c.h.b16 %v1967
        %v2207 = vunpack.c.l.b16 %v1968
        %v2208 = vunpack.c.h.b16 %v1968
        %v2209 = vunpack.c.l.b16 %v1969
        %v2210 = vunpack.c.h.b16 %v1969
        %v2211 = vunpack.c.l.b16 %v1970
        %v2212 = vunpack.c.h.b16 %v1970
        %v2213 = vunpack.c.l.b16 %v1971
        %v2214 = vunpack.c.h.b16 %v1971
        %v2215 = vunpack.c.l.b16 %v1972
        %v2216 = vunpack.c.h.b16 %v1972
        %v2217 = vunpack.c.l.b16 %v1973
        %v2218 = vunpack.c.h.b16 %v1973
        %v2219 = vunpack.c.l.b16 %v1974
        %v2220 = vunpack.c.h.b16 %v1974
        %v2221 = vunpack.c.l.b16 %v1975
        %v2222 = vunpack.c.h.b16 %v1975
        %v2223 = vunpack.c.l.b16 %v1976
        %v2224 = vunpack.c.h.b16 %v1976
        %v2225 = vunpack.c.l.b16 %v1977
        %v2226 = vunpack.c.h.b16 %v1977
        %v2227 = vunpack.c.l.b16 %v1978
        %v2228 = vunpack.c.h.b16 %v1978
        %v2229 = vunpack.c.l.b16 %v1979
        %v2230 = vunpack.c.h.b16 %v1979
        %v2231 = vunpack.c.l.b16 %v1980
        %v2232 = vunpack.c.h.b16 %v1980
        %v2233 = vunpack.c.l.b16 %v1981
        %v2234 = vunpack.c.h.b16 %v1981
        %v2235 = vunpack.c.l.b16 %v1982
        %v2236 = vunpack.c.h.b16 %v1982
        %v2237 = vunpack.c.l.b16 %v1983
        %v2238 = vunpack.c.h.b16 %v1983
        %v2239 = vunpack.c.l.b16 %v1984
        %v2240 = vunpack.c.h.b16 %v1984
        %v2241 = vunpack.c.l.b16 %v1985
        %v2242 = vunpack.c.h.b16 %v1985
        %v2243 = vunpack.c.l.b16 %v1986
        %v2244 = vunpack.c.h.b16 %v1986
        %v2245 = vunpack.c.l.b16 %v1987
        %v2246 = vunpack.c.h.b16 %v1987
        %v2247 = vunpack.c.l.b16 %v1988
        %v2248 = vunpack.c.h.b16 %v1988
        %v2249 = vunpack.c.l.b16 %v1989
        %v2250 = vunpack.c.h.b16 %v1989
        %v2251 = vunpack.c.l.b16 %v1990
        %v2252 = vunpack.c.h.b16 %v1990
        %v2253 = vunpack.c.l.b16 %v1991
        %v2254 = vunpack.c.h.b16 %v1991
        %v2255 = vunpack.c.l.b16 %v1992
        %v2256 = vunpack.c.h.b16 %v1992
        %v2257 = vunpack.c.l.b16 %v1993
        %v2258 = vunpack.c.h.b16 %v1993
        %v2259 = vunpack.c.l.b16 %v1994
        %v2260 = vunpack.c.h.b16 %v1994
        %v2261 = vunpack.c.l.b16 %v1995
        %v2262 = vunpack.c.h.b16 %v1995
        %v2263 = vunpack.c.l.b16 %v1996
        %v2264 = vunpack.c.h.b16 %v1996
        %v2265 = vunpack.c.l.b16 %v1997
        %v2266 = vunpack.c.h.b16 %v1997
        %v2267 = vunpack.c.l.b16 %v1998
        %v2268 = vunpack.c.h.b16 %v1998
        %v2269 = vunpack.c.l.b16 %v1999
        %v2270 = vunpack.c.h.b16 %v1999
        %v2271 = vunpack.c.l.b16 %v2000
        %v2272 = vunpack.c.h.b16 %v2000
        %v2273 = vunpack.c.l.b16 %v2001
        %v2274 = vunpack.c.h.b16 %v2001
        %v2275 = vunpack.c.l.b16 %v2002
        %v2276 = vunpack.c.h.b16 %v2002
        %v2277 = vunpack.c.l.b16 %v2003
        %v2278 = vunpack.c.h.b16 %v2003
        %v2279 = vunpack.c.l.b16 %v2004
        %v2280 = vunpack.c.h.b16 %v2004
        %v2281 = vunpack.c.l.b16 %v2005
        %v2282 = vunpack.c.h.b16 %v2005
        %v2283 = vunpack.c.l.b16 %v2006
        %v2284 = vunpack.c.h.b16 %v2006
        %v2285 = vunpack.c.l.b16 %v2007
        %v2286 = vunpack.c.h.b16 %v2007
        %v2287 = vunpack.c.l.b16 %v2008
        %v2288 = vunpack.c.h.b16 %v2008
        %v2289 = vunpack.c.l.b16 %v2009
        %v2290 = vunpack.c.h.b16 %v2009
        %v2291 = vunpack.c.l.b16 %v2010
        %v2292 = vunpack.c.h.b16 %v2010
        %v2293 = vunpack.c.l.b16 %v2011
        %v2294 = vunpack.c.h.b16 %v2011
        %v2295 = vunpack.c.l.b16 %v2012
        %v2296 = vunpack.c.h.b16 %v2012
        %v2297 = vunpack.c.l.b16 %v2013
        %v2298 = vunpack.c.h.b16 %v2013
        %v2299 = vunpack.c.l.b16 %v2014
        %v2300 = vunpack.c.h.b16 %v2014
        %v2301 = vunpack.c.l.b16 %v2015
        %v2302 = vunpack.c.h.b16 %v2015
        %v2303 = vunpack.c.l.b16 %v2016
        %v2304 = vunpack.c.h.b16 %v2016
        %v2305 = vunpack.c.l.b16 %v2017
        %v2306 = vunpack.c.h.b16 %v2017
        %v2307 = vunpack.c.l.b16 %v2018
        %v2308 = vunpack.c.h.b16 %v2018
        %v2309 = vunpack.c.l.b16 %v2019
        %v2310 = vunpack.c.h.b16 %v2019
        %v2311 = vunpack.c.l.b16 %v2020
        %v2312 = vunpack.c.h.b16 %v2020
        %v2313 = vunpack.c.l.b16 %v2021
        %v2314 = vunpack.c.h.b16 %v2021
        %v2315 = vunpack.c.l.b16 %v2022
        %v2316 = vunpack.c.h.b16 %v2022
        %v2317 = vunpack.c.l.b16 %v2023
        %v2318 = vunpack.c.h.b16 %v2023
        %v2319 = vunpack.c.l.b16 %v2024
        %v2320 = vunpack.c.h.b16 %v2024
        %v2321 = vunpack.c.l.b16 %v2025
        %v2322 = vunpack.c.h.b16 %v2025
        %v2323 = vunpack.c.l.b16 %v2026
        %v2324 = vunpack.c.h.b16 %v2026
        %v2325 = vunpack.c.l.b16 %v2027
        %v2326 = vunpack.c.h.b16 %v2027
        %v2327 = vunpack.c.l.b16 %v2028
        %v2328 = vunpack.c.h.b16 %v2028
        %v2329 = vunpack.c.l.b16 %v2029
        %v2330 = vunpack.c.h.b16 %v2029
        %v2331 = vunpack.c.l.b16 %v2030
        %v2332 = vunpack.c.h.b16 %v2030
        %v2333 = vunpack.c.l.b16 %v2031
        %v2334 = vunpack.c.h.b16 %v2031
        %v2335 = vunpack.c.l.b16 %v2032
        %v2336 = vunpack.c.h.b16 %v2032
        %v2337 = vunpack.c.l.b16 %v2033
        %v2338 = vunpack.c.h.b16 %v2033
        %v2339 = vunpack.c.l.b16 %v2034
        %v2340 = vunpack.c.h.b16 %v2034
        %v2341 = vunpack.c.l.b16 %v2035
        %v2342 = vunpack.c.h.b16 %v2035
        %v2343 = vunpack.c.l.b16 %v2036
        %v2344 = vunpack.c.h.b16 %v2036
        %v2345 = vunpack.c.l.b16 %v2037
        %v2346 = vunpack.c.h.b16 %v2037
        %v2347 = vunpack.c.l.b16 %v2038
        %v2348 = vunpack.c.h.b16 %v2038
        %v2349 = vunpack.c.l.b16 %v2039
        %v2350 = vunpack.c.h.b16 %v2039
        %v2351 = vunpack.c.l.b16 %v2040
        %v2352 = vunpack.c.h.b16 %v2040
        %v2353 = vunpack.c.l.b16 %v2041
        %v2354 = vunpack.c.h.b16 %v2041
        %v2355 = vunpack.c.l.b16 %v2042
        %v2356 = vunpack.c.h.b16 %v2042
        %v2357 = vunpack.c.l.b16 %v2043
        %v2358 = vunpack.c.h.b16 %v2043
        %v2359 = vunpack.c.l.b16 %v2044
        %v2360 = vunpack.c.h.b16 %v2044
        %v2361 = vunpack.c.l.b16 %v2045
        %v2362 = vunpack.c.h.b16 %v2045
        %v2363 = vunpack.c.l.b16 %v2046
        %v2364 = vunpack.c.h.b16 %v2046
        %v2365 = vunpack.c.l.b16 %v2047
        %v2366 = vunpack.c.h.b16 %v2047
        %v2367 = vunpack.c.l.b16 %v2048
        %v2368 = vunpack.c.h.b16 %v2048
        %v2369 = vunpack.c.l.b16 %v2049
        %v2370 = vunpack.c.h.b16 %v2049
        %v2371 = vunpack.c.l.b16 %v2050
        %v2372 = vunpack.c.h.b16 %v2050
        %v2373 = vunpack.c.l.b16 %v2051
        %v2374 = vunpack.c.h.b16 %v2051
        %v2375 = vunpack.c.l.b16 %v2052
        %v2376 = vunpack.c.h.b16 %v2052
        %v2377 = vunpack.c.l.b16 %v2053
        %v2378 = vunpack.c.h.b16 %v2053
        %v2379 = vunpack.c.l.b16 %v2054
        %v2380 = vunpack.c.h.b16 %v2054
        %v2381 = vunpack.c.l.b16 %v2055
        %v2382 = vunpack.c.h.b16 %v2055
        %v2383 = vunpack.c.l.b16 %v2056
        %v2384 = vunpack.c.h.b16 %v2056
        %v2385 = vunpack.c.l.b16 %v2057
        %v2386 = vunpack.c.h.b16 %v2057
        %v2387 = vunpack.c.l.b16 %v2058
        %v2388 = vunpack.c.h.b16 %v2058
        %v2389 = vunpack.c.l.b16 %v2059
        %v2390 = vunpack.c.h.b16 %v2059
        %v2391 = vunpack.c.l.b16 %v2060
        %v2392 = vunpack.c.h.b16 %v2060
        %v2393 = vunpack.c.l.b16 %v2061
        %v2394 = vunpack.c.h.b16 %v2061
        %v2395 = vunpack.c.l.b16 %v2062
        %v2396 = vunpack.c.h.b16 %v2062
        %v2397 = vunpack.c.l.b16 %v2063
        %v2398 = vunpack.c.h.b16 %v2063
        %v2399 = vunpack.c.l.b16 %v2064
        %v2400 = vunpack.c.h.b16 %v2064
        %v2401 = vunpack.c.l.b16 %v2065
        %v2402 = vunpack.c.h.b16 %v2065
        %v2403 = vunpack.c.l.b16 %v2066
        %v2404 = vunpack.c.h.b16 %v2066
        %v2405 = vunpack.c.l.b16 %v2067
        %v2406 = vunpack.c.h.b16 %v2067
        %v2407 = vpack.c.b16 %v2183, %v2181
        %v2408 = vpack.c.b16 %v2184, %v2182
        %v2409 = vpack.c.b16 %v2187, %v2185
        %v2410 = vpack.c.b16 %v2188, %v2186
        %v2411 = vpack.c.b16 %v2191, %v2189
        %v2412 = vpack.c.b16 %v2192, %v2190
        %v2413 = vpack.c.b16 %v2195, %v2193
        %v2414 = vpack.c.b16 %v2196, %v2194
        %v2415 = vpack.c.b16 %v2199, %v2197
        %v2416 = vpack.c.b16 %v2200, %v2198
        %v2417 = vpack.c.b16 %v2203, %v2201
        %v2418 = vpack.c.b16 %v2204, %v2202
        %v2419 = vpack.c.b16 %v2207, %v2205
        %v2420 = vpack.c.b16 %v2208, %v2206
        %v2421 = vpack.c.b16 %v2211, %v2209
        %v2422 = vpack.c.b16 %v2212, %v2210
        %v2423 = vpack.c.b16 %v2215, %v2213
        %v2424 = vpack.c.b16 %v2216, %v2214
        %v2425 = vpack.c.b16 %v2219, %v2217
        %v2426 = vpack.c.b16 %v2220, %v2218
        %v2427 = vpack.c.b16 %v2223, %v2221
        %v2428 = vpack.c.b16 %v2224, %v2222
        %v2429 = vpack.c.b16 %v2227, %v2225
        %v2430 = vpack.c.b16 %v2228, %v2226
        %v2431 = vpack.c.b16 %v2231, %v2229
        %v2432 = vpack.c.b16 %v2232, %v2230
        %v2433 = vpack.c.b16 %v2235, %v2233
        %v2434 = vpack.c.b16 %v2236, %v2234
        %v2435 = vpack.c.b16 %v2239, %v2237
        %v2436 = vpack.c.b16 %v2240, %v2238
        %v2437 = vpack.c.b16 %v2243, %v2241
        %v2438 = vpack.c.b16 %v2244, %v2242
        %v2439 = vpack.c.b16 %v2247, %v2245
        %v2440 = vpack.c.b16 %v2248, %v2246
        %v2441 = vpack.c.b16 %v2251, %v2249
        %v2442 = vpack.c.b16 %v2252, %v2250
        %v2443 = vpack.c.b16 %v2255, %v2253
        %v2444 = vpack.c.b16 %v2256, %v2254
        %v2445 = vpack.c.b16 %v2259, %v2257
        %v2446 = vpack.c.b16 %v2260, %v2258
        %v2447 = vpack.c.b16 %v2263, %v2261
        %v2448 = vpack.c.b16 %v2264, %v2262
        %v2449 = vpack.c.b16 %v2267, %v2265
        %v2450 = vpack.c.b16 %v2268, %v2266
        %v2451 = vpack.c.b16 %v2271, %v2269
        %v2452 = vpack.c.b16 %v2272, %v2270
        %v2453 = vpack.c.b16 %v2275, %v2273
        %v2454 = vpack.c.b16 %v2276, %v2274
        %v2455 = vpack.c.b16 %v2279, %v2277
        %v2456 = vpack.c.b16 %v2280, %v2278
        %v2457 = vpack.c.b16 %v2283, %v2281
        %v2458 = vpack.c.b16 %v2284, %v2282
        %v2459 = vpack.c.b16 %v2287, %v2285
        %v2460 = vpack.c.b16 %v2288, %v2286
        %v2461 = vpack.c.b16 %v2291, %v2289
        %v2462 = vpack.c.b16 %v2292, %v2290
        %v2463 = vpack.c.b16 %v2295, %v2293
        %v2464 = vpack.c.b16 %v2296, %v2294
        %v2465 = vpack.c.b16 %v2299, %v2297
        %v2466 = vpack.c.b16 %v2300, %v2298
        %v2467 = vpack.c.b16 %v2303, %v2301
        %v2468 = vpack.c.b16 %v2304, %v2302
        %v2469 = vpack.c.b16 %v2307, %v2305
        %v2470 = vpack.c.b16 %v2308, %v2306
        %v2471 = vpack.c.b16 %v2311, %v2309
        %v2472 = vpack.c.b16 %v2312, %v2310
        %v2473 = vpack.c.b16 %v2315, %v2313
        %v2474 = vpack.c.b16 %v2316, %v2314
        %v2475 = vpack.c.b16 %v2319, %v2317
        %v2476 = vpack.c.b16 %v2320, %v2318
        %v2477 = vpack.c.b16 %v2323, %v2321
        %v2478 = vpack.c.b16 %v2324, %v2322
        %v2479 = vpack.c.b16 %v2327, %v2325
        %v2480 = vpack.c.b16 %v2328, %v2326
        %v2481 = vpack.c.b16 %v2331, %v2329
        %v2482 = vpack.c.b16 %v2332, %v2330
        %v2483 = vpack.c.b16 %v2335, %v2333
        %v2484 = vpack.c.b16 %v2336, %v2334
        %v2485 = vpack.c.b16 %v2339, %v2337
        %v2486 = vpack.c.b16 %v2340, %v2338
        %v2487 = vpack.c.b16 %v2343, %v2341
        %v2488 = vpack.c.b16 %v2344, %v2342
        %v2489 = vpack.c.b16 %v2347, %v2345
        %v2490 = vpack.c.b16 %v2348, %v2346
        %v2491 = vpack.c.b16 %v2351, %v2349
        %v2492 = vpack.c.b16 %v2352, %v2350
        %v2493 = vpack.c.b16 %v2355, %v2353
        %v2494 = vpack.c.b16 %v2356, %v2354
        %v2495 = vpack.c.b16 %v2359, %v2357
        %v2496 = vpack.c.b16 %v2360, %v2358
        %v2497 = vpack.c.b16 %v2363, %v2361
        %v2498 = vpack.c.b16 %v2364, %v2362
        %v2499 = vpack.c.b16 %v2367, %v2365
        %v2500 = vpack.c.b16 %v2368, %v2366
        %v2501 = vpack.c.b16 %v2371, %v2369
        %v2502 = vpack.c.b16 %v2372, %v2370
        %v2503 = vpack.c.b16 %v2375, %v2373
        %v2504 = vpack.c.b16 %v2376, %v2374
        %v2505 = vpack.c.b16 %v2379, %v2377
        %v2506 = vpack.c.b16 %v2380, %v2378
        %v2507 = vpack.c.b16 %v2383, %v2381
        %v2508 = vpack.c.b16 %v2384, %v2382
        %v2509 = vpack.c.b16 %v2387, %v2385
        %v2510 = vpack.c.b16 %v2388, %v2386
        %v2511 = vpack.c.b16 %v2391, %v2389
        %v2512 = vpack.c.b16 %v2392, %v2390
        %v2513 = vpack.c.b16 %v2395, %v2393
        %v2514 = vpack.c.b16 %v2396, %v2394
        %v2515 = vpack.c.b16 %v2399, %v2397
        %v2516 = vpack.c.b16 %v2400, %v2398
        %v2517 = vpack.c.b16 %v2403, %v2401
        %v2518 = vpack.c.b16 %v2404, %v2402
        %v2519 = vpack.c.b16 %v2405, %v2405
        %v2520 = vpack.c.b16 %v2406, %v2406
        %vm2633 = vcmask 31744
        %v2635 = vsel %vm2633, %v1954, 0
        %v2638 = vsel %vm1550, %v2519, 0
        %v2641 = vsel %vm1550, %v2520, 0
        %2643 = vmatprep.subr.bf16.mxu0 %v2408
        %2644 = vmatpush1.bf16.msra.mxu0 %v2407
        %2645 = vmatprep.subr.bf16.mxu0 %v2410
        %2646 = vmatpush1.bf16.msra.mxu0 %v2409
        %2647 = vmatprep.subr.bf16.mxu0 %v2412
        %2648 = vmatpush1.bf16.msra.mxu0 %v2411
        %2649 = vmatprep.subr.bf16.mxu0 %v2414
        %2650 = vmatpush1.bf16.msra.mxu0 %v2413
        %2651 = vmatprep.subr.bf16.mxu0 %v2416
        %2652 = vmatpush1.bf16.msra.mxu0 %v2415
        %2653 = vmatprep.subr.bf16.mxu0 %v2418
        %2654 = vmatpush1.bf16.msra.mxu0 %v2417
        %2655 = vmatprep.subr.bf16.mxu0 %v2420
        %2656 = vmatpush1.bf16.msra.mxu0 %v2419
        %2657 = vmatprep.subr.bf16.mxu0 %v2422
        %2658 = vmatpush1.bf16.msra.mxu0 %v2421
        %2659 = vmatprep.subr.bf16.mxu0 %v2424
        %2660 = vmatpush1.bf16.msra.mxu0 %v2423
        %2661 = vmatprep.subr.bf16.mxu0 %v2426
        %2662 = vmatpush1.bf16.msra.mxu0 %v2425
        %2663 = vmatprep.subr.bf16.mxu0 %v2428
        %2664 = vmatpush1.bf16.msra.mxu0 %v2427
        %2665 = vmatprep.subr.bf16.mxu0 %v2430
        %2666 = vmatpush1.bf16.msra.mxu0 %v2429
        %2667 = vmatprep.subr.bf16.mxu0 %v2432
        %2668 = vmatpush1.bf16.msra.mxu0 %v2431
        %2669 = vmatprep.subr.bf16.mxu0 %v2434
        %2670 = vmatpush1.bf16.msra.mxu0 %v2433
        %2671 = vmatprep.subr.bf16.mxu0 %v2436
        %2672 = vmatpush1.bf16.msra.mxu0 %v2435
        %2673 = vmatprep.subr.bf16.mxu0 %v2438
        %2674 = vmatpush1.bf16.msra.mxu0 %v2437
        %2675 = vmatprep.mubr.bf16.mxu0 %v1948
        %2676 = vmatmul.mubr.bf16.gmra.mrb[0].mxu0 %v1947
        %v2677 = vpop.f32.mrb[0].mxu0
        %v2678 = vadd.f32 0.0, %v2677
        %v2679 = vpop.f32.mrb[0].mxu0
        %v2680 = vpop.f32.mrb[0].mxu0
        %v2681 = vadd.f32 0.0, %v2680
        %v2682 = vpop.f32.mrb[0].mxu0
        %v2683 = vadd.f32 0.0, %v2682
        %2684 = vdwg.mxu0
        %2685 = vmatprep.subr.bf16.mxu0 %v2440
        %2686 = vmatpush1.bf16.msra.mxu0 %v2439
        %2687 = vmatprep.subr.bf16.mxu0 %v2442
        %2688 = vmatpush1.bf16.msra.mxu0 %v2441
        %2689 = vmatprep.subr.bf16.mxu0 %v2444
        %2690 = vmatpush1.bf16.msra.mxu0 %v2443
        %2691 = vmatprep.subr.bf16.mxu0 %v2446
        %2692 = vmatpush1.bf16.msra.mxu0 %v2445
        %2693 = vmatprep.subr.bf16.mxu0 %v2448
        %2694 = vmatpush1.bf16.msra.mxu0 %v2447
        %2695 = vmatprep.subr.bf16.mxu0 %v2450
        %2696 = vmatpush1.bf16.msra.mxu0 %v2449
        %2697 = vmatprep.subr.bf16.mxu0 %v2452
        %2698 = vmatpush1.bf16.msra.mxu0 %v2451
        %2699 = vmatprep.subr.bf16.mxu0 %v2454
        %2700 = vmatpush1.bf16.msra.mxu0 %v2453
        %2701 = vmatprep.subr.bf16.mxu0 %v2456
        %2702 = vmatpush1.bf16.msra.mxu0 %v2455
        %2703 = vmatprep.subr.bf16.mxu0 %v2458
        %2704 = vmatpush1.bf16.msra.mxu0 %v2457
        %2705 = vmatprep.subr.bf16.mxu0 %v2460
        %2706 = vmatpush1.bf16.msra.mxu0 %v2459
        %2707 = vmatprep.subr.bf16.mxu0 %v2462
        %2708 = vmatpush1.bf16.msra.mxu0 %v2461
        %2709 = vmatprep.subr.bf16.mxu0 %v2464
        %2710 = vmatpush1.bf16.msra.mxu0 %v2463
        %2711 = vmatprep.subr.bf16.mxu0 %v2466
        %2712 = vmatpush1.bf16.msra.mxu0 %v2465
        %2713 = vmatprep.subr.bf16.mxu0 %v2468
        %2714 = vmatpush1.bf16.msra.mxu0 %v2467
        %2715 = vmatprep.subr.bf16.mxu0 %v2470
        %2716 = vmatpush1.bf16.msra.mxu0 %v2469
        %2717 = vmatprep.mubr.bf16.mxu0 %v1950
        %2718 = vmatmul.mubr.bf16.gmra.mrb[0].mxu0 %v1949
        %v2719 = vpop.f32.mrb[0].mxu0
        %v2720 = vadd.f32 %v2678, %v2719
        %v2721 = vpop.f32.mrb[0].mxu0
        %v2722 = vpop.f32.mrb[0].mxu0
        %v2723 = vadd.f32 %v2681, %v2722
        %v2724 = vpop.f32.mrb[0].mxu0
        %v2725 = vadd.f32 %v2683, %v2724
        %2726 = vdwg.mxu0
        %2727 = vmatprep.subr.bf16.mxu0 %v2472
        %2728 = vmatpush1.bf16.msra.mxu0 %v2471
        %2729 = vmatprep.subr.bf16.mxu0 %v2474
        %2730 = vmatpush1.bf16.msra.mxu0 %v2473
        %2731 = vmatprep.subr.bf16.mxu0 %v2476
        %2732 = vmatpush1.bf16.msra.mxu0 %v2475
        %2733 = vmatprep.subr.bf16.mxu0 %v2478
        %2734 = vmatpush1.bf16.msra.mxu0 %v2477
        %2735 = vmatprep.subr.bf16.mxu0 %v2480
        %2736 = vmatpush1.bf16.msra.mxu0 %v2479
        %2737 = vmatprep.subr.bf16.mxu0 %v2482
        %2738 = vmatpush1.bf16.msra.mxu0 %v2481
        %2739 = vmatprep.subr.bf16.mxu0 %v2484
        %2740 = vmatpush1.bf16.msra.mxu0 %v2483
        %2741 = vmatprep.subr.bf16.mxu0 %v2486
        %2742 = vmatpush1.bf16.msra.mxu0 %v2485
        %2743 = vmatprep.subr.bf16.mxu0 %v2488
        %2744 = vmatpush1.bf16.msra.mxu0 %v2487
        %2745 = vmatprep.subr.bf16.mxu0 %v2490
        %2746 = vmatpush1.bf16.msra.mxu0 %v2489
        %2747 = vmatprep.subr.bf16.mxu0 %v2492
        %2748 = vmatpush1.bf16.msra.mxu0 %v2491
        %2749 = vmatprep.subr.bf16.mxu0 %v2494
        %2750 = vmatpush1.bf16.msra.mxu0 %v2493
        %2751 = vmatprep.subr.bf16.mxu0 %v2496
        %2752 = vmatpush1.bf16.msra.mxu0 %v2495
        %2753 = vmatprep.subr.bf16.mxu0 %v2498
        %2754 = vmatpush1.bf16.msra.mxu0 %v2497
        %2755 = vmatprep.subr.bf16.mxu0 %v2500
        %2756 = vmatpush1.bf16.msra.mxu0 %v2499
        %2757 = vmatprep.subr.bf16.mxu0 %v2502
        %2758 = vmatpush1.bf16.msra.mxu0 %v2501
        %2759 = vmatprep.mubr.bf16.mxu0 %v1952
        %2760 = vmatmul.mubr.bf16.gmra.mrb[0].mxu0 %v1951
        %v2761 = vpop.f32.mrb[0].mxu0
        %v2762 = vadd.f32 %v2720, %v2761
        %v2763 = vpop.f32.mrb[0].mxu0
        %v2764 = vpop.f32.mrb[0].mxu0
        %v2765 = vadd.f32 %v2723, %v2764
        %v2766 = vpop.f32.mrb[0].mxu0
        %v2767 = vadd.f32 %v2725, %v2766
        %2768 = vdwg.mxu0
        %2769 = vmatprep.subr.bf16.mxu0 %v2504
        %2770 = vmatpush1.bf16.msra.mxu0 %v2503
        %2771 = vmatprep.subr.bf16.mxu0 %v2506
        %2772 = vmatpush1.bf16.msra.mxu0 %v2505
        %2773 = vmatprep.subr.bf16.mxu0 %v2508
        %2774 = vmatpush1.bf16.msra.mxu0 %v2507
        %2775 = vmatprep.subr.bf16.mxu0 %v2510
        %2776 = vmatpush1.bf16.msra.mxu0 %v2509
        %2777 = vmatprep.subr.bf16.mxu0 %v2512
        %2778 = vmatpush1.bf16.msra.mxu0 %v2511
        %2779 = vmatprep.subr.bf16.mxu0 %v2514
        %2780 = vmatpush1.bf16.msra.mxu0 %v2513
        %2781 = vmatprep.subr.bf16.mxu0 %v2516
        %2782 = vmatpush1.bf16.msra.mxu0 %v2515
        %2783 = vmatprep.subr.bf16.mxu0 %v2518
        %2784 = vmatpush1.bf16.msra.mxu0 %v2517
        %2785 = vmatprep.subr.bf16.mxu0 %v2641
        %2786 = vmatpush1.bf16.msra.mxu0 %v2638
        %2787 = vmatprep.subr.bf16.mxu0 0
        %2788 = vmatpush1.bf16.msra.mxu0 0
        %2789 = vmatprep.subr.bf16.mxu0 0
        %2790 = vmatpush1.bf16.msra.mxu0 0
        %2791 = vmatprep.subr.bf16.mxu0 0
        %2792 = vmatpush1.bf16.msra.mxu0 0
        %2793 = vmatprep.subr.bf16.mxu0 0
        %2794 = vmatpush1.bf16.msra.mxu0 0
        %2795 = vmatprep.subr.bf16.mxu0 0
        %2796 = vmatpush1.bf16.msra.mxu0 0
        %2797 = vmatprep.subr.bf16.mxu0 0
        %2798 = vmatpush1.bf16.msra.mxu0 0
        %2799 = vmatprep.subr.bf16.mxu0 0
        %2800 = vmatpush1.bf16.msra.mxu0 0
        %2801 = vmatprep.mubr.bf16.mxu0 %v2635
        %2802 = vmatmul.mubr.bf16.gmra.mrb[0].mxu0 %v1953
        %v2803 = vpop.f32.mrb[0].mxu0
        %v2804 = vadd.f32 %v2762, %v2803
        %v2805 = vpop.f32.mrb[0].mxu0
        %v2806 = vpop.f32.mrb[0].mxu0
        %v2807 = vadd.f32 %v2765, %v2806
        %v2808 = vpop.f32.mrb[0].mxu0
        %v2809 = vadd.f32 %v2767, %v2808
        %2810 = vdwg.mxu0
        %v2811 = vld [vmem:[%s6] sm:$0x1]
        %v2812 = vadd.f32 %v2811, %v2804
        %v2815 = vunpack.c.l.s4 1966171168
        %v2816 = vunpack.c.0.s8 %v2815
        %v2817 = vlaneseq
        %v2818 = vshrl.u32 %v2817, 7
        %v2819 = vsub.s32 %v2816, %v2818
        %v2820 = vrot.slane %v2804, %v2819
        %v2821 = vcombine.high %v2820, %v2820
        %v2823 = vunpack.c.l.s4 1966171168
        %v2824 = vunpack.c.0.s8 %v2823
        %v2825 = vlaneseq
        %v2826 = vshrl.u32 %v2825, 7
        %v2827 = vsub.s32 %v2824, %v2826
        %v2828 = vrot.slane %v2820, %v2827
        %v2830 = vunpack.c.l.s4 1966171168
        %v2831 = vunpack.c.0.s8 %v2830
        %v2832 = vlaneseq
        %v2833 = vshrl.u32 %v2832, 7
        %v2834 = vsub.s32 %v2831, %v2833
        %v2835 = vrot.slane %v2821, %v2834
        %2836 = vrot.lane.b32.xlu0 %v2835, 118
        %v2837 = vpop.permute.xlu0 %2836
        %v2839 = vadd.f32 %v2812, %v2837
        %v2840 = vcombine.high %v2828, %v2828
        %2841 = vrot.lane.b32.xlu0 %v2840, 108
        %v2842 = vpop.permute.xlu0 %2841
        %v2844 = vadd.f32 %v2839, %v2842
        %v2845 = vcombine.high %v2835, %v2835
        %2846 = vrot.lane.b32.xlu0 %v2845, 98
        %v2847 = vpop.permute.xlu0 %2846
        %v2849 = vadd.f32 %v2844, %v2847
        %v2850 = vcombine.high %v2804, %v2804
        %v2852 = vunpack.c.l.s4 1966171168
        %v2853 = vunpack.c.0.s8 %v2852
        %v2854 = vlaneseq
        %v2855 = vshrl.u32 %v2854, 7
        %v2856 = vsub.s32 %v2853, %v2855
        %v2857 = vrot.slane %v2850, %v2856
        %v2859 = vunpack.c.l.s4 1966171168
        %v2860 = vunpack.c.0.s8 %v2859
        %v2861 = vlaneseq
        %v2862 = vshrl.u32 %v2861, 7
        %v2863 = vsub.s32 %v2860, %v2862
        %v2864 = vrot.slane %v2857, %v2863
        %2865 = vrot.lane.b32.xlu0 %v2864, 88
        %v2866 = vpop.permute.xlu0 %2865
        %v2868 = vadd.f32 %v2849, %v2866
        %v2869 = vcombine.high %v2857, %v2857
        %v2871 = vunpack.c.l.s4 1966171168
        %v2872 = vunpack.c.0.s8 %v2871
        %v2873 = vlaneseq
        %v2874 = vshrl.u32 %v2873, 7
        %v2875 = vsub.s32 %v2872, %v2874
        %v2876 = vrot.slane %v2869, %v2875
        %2877 = vrot.lane.b32.xlu0 %v2876, 78
        %v2878 = vpop.permute.xlu0 %2877
        %v2880 = vadd.f32 %v2868, %v2878
        %v2881 = vcombine.high %v2864, %v2864
        %2882 = vrot.lane.b32.xlu0 %v2881, 68
        %v2883 = vpop.permute.xlu0 %2882
        %v2885 = vadd.f32 %v2880, %v2883
        %v2886 = vcombine.high %v2876, %v2876
        %2887 = vrot.lane.b32.xlu0 %v2886, 58
        %v2888 = vpop.permute.xlu0 %2887
        %v2890 = vadd.f32 %v2885, %v2888
        %v2893 = vunpack.c.l.s4 1966171168
        %v2894 = vunpack.c.0.s8 %v2893
        %v2895 = vlaneseq
        %v2896 = vshrl.u32 %v2895, 7
        %v2897 = vsub.s32 %v2894, %v2896
        %v2898 = vrot.slane %v2807, %v2897
        %v2900 = vunpack.c.l.s4 1966171168
        %v2901 = vunpack.c.0.s8 %v2900
        %v2902 = vlaneseq
        %v2903 = vshrl.u32 %v2902, 7
        %v2904 = vsub.s32 %v2901, %v2903
        %v2905 = vrot.slane %v2898, %v2904
        %2906 = vrot.lane.b32.xlu0 %v2905, 48
        %v2907 = vpop.permute.xlu0 %2906
        %v2909 = vadd.f32 %v2890, %v2907
        %v2910 = vcombine.high %v2898, %v2898
        %v2912 = vunpack.c.l.s4 1966171168
        %v2913 = vunpack.c.0.s8 %v2912
        %v2914 = vlaneseq
        %v2915 = vshrl.u32 %v2914, 7
        %v2916 = vsub.s32 %v2913, %v2915
        %v2917 = vrot.slane %v2910, %v2916
        %2918 = vrot.lane.b32.xlu0 %v2917, 38
        %v2919 = vpop.permute.xlu0 %2918
        %v2921 = vadd.f32 %v2909, %v2919
        %v2922 = vcombine.high %v2905, %v2905
        %2923 = vrot.lane.b32.xlu0 %v2922, 28
        %v2924 = vpop.permute.xlu0 %2923
        %v2926 = vadd.f32 %v2921, %v2924
        %v2927 = vcombine.high %v2917, %v2917
        %2928 = vrot.lane.b32.xlu0 %v2927, 18
        %v2929 = vpop.permute.xlu0 %2928
        %v2931 = vadd.f32 %v2926, %v2929
        %v2933 = vcombine.high %v2807, %v2809
        %v2935 = vunpack.c.l.s4 1966171168
        %v2936 = vunpack.c.0.s8 %v2935
        %v2937 = vlaneseq
        %v2938 = vshrl.u32 %v2937, 7
        %v2939 = vsub.s32 %v2936, %v2938
        %v2940 = vrot.slane %v2933, %v2939
        %v2942 = vunpack.c.l.s4 1966171168
        %v2943 = vunpack.c.0.s8 %v2942
        %v2944 = vlaneseq
        %v2945 = vshrl.u32 %v2944, 7
        %v2946 = vsub.s32 %v2943, %v2945
        %v2947 = vrot.slane %v2940, %v2946
        %2948 = vrot.lane.b32.xlu0 %v2947, 8
        %v2949 = vpop.permute.xlu0 %2948
        %v2950 = vrot.slane %v2949, 1
        %vm2951 = vcmask 64512
        %v2952 = vsel %vm2951, %v2949, %v2950
        %v2954 = vadd.f32 %v2931, %v2952
        %v2955 = vcombine.high %v2809, %v2809
        %v2957 = vunpack.c.l.s4 1966171168
        %v2958 = vunpack.c.0.s8 %v2957
        %v2959 = vlaneseq
        %v2960 = vshrl.u32 %v2959, 7
        %v2961 = vsub.s32 %v2958, %v2960
        %v2962 = vrot.slane %v2955, %v2961
        %v2963 = vcombine.high %v2962, %v2962
        %v2965 = vunpack.c.l.s4 1966171168
        %v2966 = vunpack.c.0.s8 %v2965
        %v2967 = vlaneseq
        %v2968 = vshrl.u32 %v2967, 7
        %v2969 = vsub.s32 %v2966, %v2968
        %v2970 = vrot.slane %v2963, %v2969
        %2971 = vrot.lane.b32.xlu0 %v2970, 126
        %v2972 = vpop.permute.xlu0 %2971
        %v2974 = vadd.f32 %v2954, %v2972
        %v2976 = vunpack.c.l.s4 1966171168
        %v2977 = vunpack.c.0.s8 %v2976
        %v2978 = vlaneseq
        %v2979 = vshrl.u32 %v2978, 7
        %v2980 = vsub.s32 %v2977, %v2979
        %v2981 = vrot.slane %v2962, %v2980
        %v2982 = vcombine.high %v2981, %v2981
        %2983 = vrot.lane.b32.xlu0 %v2982, 116
        %v2984 = vpop.permute.xlu0 %2983
        %v2986 = vadd.f32 %v2974, %v2984
        %vm2987 = vcmask 73728
        %2988 = vst.msk [vmem:[%s297] sm:$0x1] %vm2987, %v2986
        %s2989 = sand.u32 %s203, 1
        %s2990 = scalar_lea.sflag [#allocation3], %s2989
        %s2991 = sand.u32 %s203, 1
        %s2992 = scalar_lea.vmem [#allocation2], %s2991
        // Predicated region
        $region53: #{convnet_forward.1} parent=51 // pred_check
          %p2993 = pneg %p213
        $region54: #{convnet_forward.1} parent=51 // pred_check_branch
          %2995 = sbr.rel (%p2993) target = $region56
        $region55: #{convnet_forward.1} parent=51 // pred_region
          %s2997 = ssub.s32 16, 16
          %2998 = vsyncadd %s2990, %s2997
          %s2999 = smul.addr %s22, 16
          %s3000 = scalar_lea.hbm %s8, %s2999
          %s3002 = sshll.u32 %s2992, 4
          %s3003 = int_to_ptr.vmem [resolvable:$true] %s3002
          %3005 = dma.vmem_to_hbm [thread:$0]  %s3003, 16, %s3000, %s2990
        $region56: #{convnet_forward.1} parent=51 // pred_fallthru
          _
      $region52: #{convnet_forward.1} parent=5 // pred_fallthru
        _
      %p3006 = scmp.le.s32.totalorder 2, %s17
      // Predicated region
      $region57: #{convnet_forward.1} parent=5 // pred_check
        %p3007 = pneg %p3006
      $region58: #{convnet_forward.1} parent=5 // pred_check_branch
        %3009 = sbr.rel (%p3007) target = $region60
      $region59: #{convnet_forward.1} parent=5 // pred_region
        %s3010 = ssub.s32 %s17, 2
        // Predicated region
        $region61: #{convnet_forward.1} parent=59 // pred_check
          %p3011 = pneg %p219
        $region62: #{convnet_forward.1} parent=59 // pred_check_branch
          %3013 = sbr.rel (%p3011) target = $region64
        $region63: #{convnet_forward.1} parent=59 // pred_region
          %s3014 = sand.u32 %s204, 1
          %s3015 = scalar_lea.sflag [#allocation3], %s3014
          %s3016 = sand.u32 %s204, 1
          %s3017 = scalar_lea.vmem [#allocation2], %s3016
          %3018 = dma.done %s3015, 16
        $region64: #{convnet_forward.1} parent=59 // pred_fallthru
          _
      $region60: #{convnet_forward.1} parent=5 // pred_fallthru
        _
    $region6: #{convnet_forward.1} parent=1 // loop_footer
      %s21 = sadd.s32 1, %s17
    $region7: #{convnet_forward.1} parent=1 // loop_footer_branch
      %16 = sbr.rel target = $region3
    $region8: #{convnet_forward.1} parent=1 // loop_exit
      _
    %3019 = vsyncpa [#allocation3], 1
    %s3020 = scalar_lea.sflag [#allocation3], 1
    %3021 = vsyncpa %s3020, 1

</llo_original>
